<compile_context>
chip_gen: v7x
topology: tpu7x:2x2x1
jax: 0.10.0
libtpu: 0.0.40
codegen_flags: <defaults>
</compile_context>

<pallas_src>
import functools

import numpy as np
import jax
import jax.numpy as jnp
from jax.experimental import pallas as pl
from jax.experimental.pallas import tpu as pltpu

FILTERS = (3, 3, 3, 3)          # EntropyBottleneck filter widths (compressai default)
INIT_SCALE = 10.0
LIKELIHOOD_BOUND = 1e-9
SCALE_BOUND = 0.11
_DIMS = (1,) + FILTERS + (1,)   # (1,3,3,3,3,1)
_NUM_LAYERS = len(_DIMS) - 1    # 5
_MAXF = max(_DIMS)              # 3
_INV_SQRT2 = 0.7071067811865476


def _round_up(x, m):
    return ((x + m - 1) // m) * m


# ----------------------------- in-kernel math helpers -----------------------------
# Abramowitz & Stegun 7.1.26 erfc coefficients (|err| ~ 1.5e-7).
_A1, _A2, _A3, _A4, _A5 = 0.254829592, -0.284496736, 1.421413741, -1.453152027, 1.061405429
_P = 0.3275911


def _half_erfc(y):
    """0.5 * erfc(y).  For y >= 0 the small tail is returned directly (no 1-x
    cancellation), so the upper-lower likelihood difference stays accurate far
    into the Gaussian tails."""
    ay = jnp.abs(y)
    t = 1.0 / (1.0 + _P * ay)
    poly = ((((_A5 * t + _A4) * t + _A3) * t + _A2) * t + _A1) * t
    e = 0.5 * poly * jnp.exp(-ay * ay)            # = 0.5*erfc(|y|)
    return jnp.where(y >= 0.0, e, 1.0 - e)


def _logits_cumulative(v, Hs, bm, ta, tanh_dtype):
    """Factorized-prior cumulative logits, fused over the lower/upper halves.

    v : (2, C, T)  stacked (z-0.5, z+0.5) values (leading axis, no sublane concat)
    Hs: (C, L*MAXF*MAXF)  softplus'd matrices (hoisted in the wrapper)
    bm: (C, L*MAXF)       biases
    ta: (C, L*MAXF)       tanh'd factors (hoisted in the wrapper)
    The tiny filter dims are unrolled in Python.  Accumulation stays in f32;
    only the tanh nonlinearity runs in `tanh_dtype` (bf16 on v6e/v7x EUP).
    """
    state = [v]
    for k in range(_NUM_LAYERS):
        f_in, f_out = _DIMS[k], _DIMS[k + 1]
        new_state = []
        for fo in range(f_out):
            acc = None
            for fi in range(f_in):
                widx = k * (_MAXF * _MAXF) + fo * _MAXF + fi
                term = Hs[:, widx:widx + 1] * state[fi]      # (C,1)*(2,C,T)
                acc = term if acc is None else acc + term
            bidx = k * _MAXF + fo
            acc = acc + bm[:, bidx:bidx + 1]
            if k < _NUM_LAYERS - 1:
                t = jnp.tanh(acc.astype(tanh_dtype)).astype(jnp.float32)
                acc = acc + ta[:, bidx:bidx + 1] * t
            new_state.append(acc)
        state = new_state
    return state[0]                                          # (2, C, T)


# --------------------------------- Pallas kernel ----------------------------------
def _hyperprior_kernel(x_ref, nz_ref, ny_ref, hs_ref, bm_ref, ta_ref,
                       recon_ref, ylike_ref, zlike_ref, *, tanh_dtype):
    x = x_ref[...]                 # (C, T)
    nz = nz_ref[...]               # (C, T) U[-0.5, 0.5) noise for z
    ny = ny_ref[...]               # (C, T) U[-0.5, 0.5) noise for y
    hs = hs_ref[...]               # (C, L*9)   softplus already applied
    bmat = bm_ref[...]             # (C, L*3)
    ta = ta_ref[...]               # (C, L*3)   tanh already applied

    # analysis(): empty nn.Sequential -> identity
    features = x
    # use_abs = (not use_mean) or use_abs  -> True with module defaults
    hyperpriors = jnp.abs(features)

    # ------- EntropyBottleneck forward (quant_mode='noise') -------
    z_tilde = hyperpriors + nz
    v = jnp.stack([z_tilde - 0.5, z_tilde + 0.5], axis=0)    # (2, C, T)
    logits = _logits_cumulative(v, hs, bmat, ta, tanh_dtype)
    lo = logits[0]
    up = logits[1]
    # |sigmoid(a) - sigmoid(b)| fused as |e^a - e^b| / ((1+e^a)(1+e^b)).
    # The sign trick keeps a + b <= 0; clipping guards exp overflow (clipped
    # cases are far below the 1e-9 likelihood clamp / saturate at 1 anyway).
    sgn = jnp.where(lo + up < 0.0, 1.0, -1.0)
    a = jnp.clip(sgn * up, -60.0, 60.0)
    b = jnp.clip(sgn * lo, -60.0, 60.0)
    ea = jnp.exp(a)
    eb = jnp.exp(b)
    z_like = jnp.abs(ea - eb) / ((1.0 + ea) * (1.0 + eb))
    z_like = jnp.maximum(z_like, LIKELIHOOD_BOUND)

    # hyper_synthesis(): empty nn.Sequential -> identity
    condition = z_tilde

    # ------- GaussianConditional(use_mean=False) forward (quant_mode='noise') -------
    scales = jnp.maximum(condition, SCALE_BOUND)
    y_tilde = features + ny
    vals = jnp.abs(y_tilde)
    inv = _INV_SQRT2 / scales
    upper = _half_erfc((vals - 0.5) * inv)     # = Phi((0.5 - vals)/scale)
    lower = _half_erfc((vals + 0.5) * inv)     # = Phi((-0.5 - vals)/scale)
    y_like = jnp.maximum(upper - lower, LIKELIHOOD_BOUND)

    # synthesis(): empty nn.Sequential -> identity
    recon_ref[...] = y_tilde
    ylike_ref[...] = y_like
    zlike_ref[...] = z_like


# ------------------------------ parameters & wrapper -------------------------------
def init_entropy_bottleneck_params(num_channels, key):
    """Deterministic compressai-style init: constant matrices, U(-.5,.5) biases,
    zero factors. Padded to (L, C, 3, 3)/(L, C, 3); padding is never read."""
    scale = INIT_SCALE ** (1.0 / (len(FILTERS) + 1))
    Hm = np.zeros((_NUM_LAYERS, num_channels, _MAXF, _MAXF), np.float32)
    bm = np.zeros((_NUM_LAYERS, num_channels, _MAXF), np.float32)
    am = np.zeros((_NUM_LAYERS, num_channels, _MAXF), np.float32)
    keys = jax.random.split(key, _NUM_LAYERS)
    for k in range(_NUM_LAYERS):
        f_in, f_out = _DIMS[k], _DIMS[k + 1]
        init = float(np.log(np.expm1(1.0 / scale / f_out)))
        Hm[k, :, :f_out, :f_in] = init
        b = jax.random.uniform(keys[k], (num_channels, f_out), jnp.float32, -0.5, 0.5)
        bm[k, :, :f_out] = np.asarray(b)
        # factors (am) stay zero -> tanh(0) = 0, matching compressai init
    return jnp.asarray(Hm), jnp.asarray(bm), jnp.asarray(am)


def _prepare_params(Hm, bm, am):
    """Hoist softplus/tanh out of the kernel and flatten params into a
    lane-friendly (C, ...) layout."""
    L, C = Hm.shape[0], Hm.shape[1]
    Hs = jax.nn.softplus(Hm)                                     # (L,C,3,3)
    ta = jnp.tanh(am)                                            # (L,C,3)
    Hflat = jnp.transpose(Hs, (1, 0, 2, 3)).reshape(C, L * _MAXF * _MAXF)
    bflat = jnp.transpose(bm, (1, 0, 2)).reshape(C, L * _MAXF)
    aflat = jnp.transpose(ta, (1, 0, 2)).reshape(C, L * _MAXF)
    return Hflat, bflat, aflat


def _tanh_dtype():
    """bf16 EUP/VPU exists on v6e (Trillium) and v7x (~2x transcendental
    throughput).  Keep f32 on v5e and earlier, and anywhere detection fails
    (e.g. CPU interpret mode)."""
    try:
        kind = jax.devices()[0].device_kind.lower()
    except Exception:
        return jnp.float32
    if any(tag in kind for tag in ("v6", "v7", "7x", "trillium")):
        return jnp.bfloat16
    return jnp.float32


def _choose_tile(HW, C, B):
    """Pick a lane tile: multiple of 128, dividing HW when possible (no wrapper
    pad/slice copies), capped by a VMEM estimate that fits v7x's 64 MiB/TC, and
    shrunk (if cheap) so the grid has enough parallel steps for megacore."""
    # ~ double-buffered (3 in + 3 out) blocks + ~16 live (2,C,T)/(C,T) f32 temps.
    per_lane_bytes = 44 * C * 4
    budget = 36 * 2 ** 20
    cap = max(128, min(8192, (budget // per_lane_bytes) // 128 * 128))

    if HW % 128 == 0:
        tile_n = 128
        t = 128
        limit = min(HW, cap)
        while t <= limit:
            if HW % t == 0:
                tile_n = t
            t += 128
        n_pad = HW
    else:
        tile_n = min(cap, _round_up(HW, 128))
        n_pad = _round_up(HW, tile_n)

    # Megacore occupancy (v7x: 2 TCs): prefer >= 8 grid steps when it costs nothing.
    while (tile_n >= 256 and tile_n % 256 == 0
           and B * (n_pad // tile_n) < 8 and n_pad % (tile_n // 2) == 0):
        tile_n //= 2
    return tile_n, n_pad


def hyperprior_coder_forward(x, Hm, bm, am, seed=0, tile_n=None,
                             noise_z=None, noise_y=None):
    """x: NCHW float32. Returns (reconstructed, (y_likelihood, z_likelihood)),
    all NCHW, matching HyperPriorCoder.forward with the module defaults."""
    B, C, H, W = x.shape
    HW = H * W

    auto_tile, n_pad = _choose_tile(HW, C, B)
    if tile_n is None:
        tile_n = auto_tile
    else:
        tile_n = max(128, _round_up(int(tile_n), 128))
        n_pad = _round_up(HW, tile_n)

    # Quantization noise U[-0.5, 0.5): generated on-device outside the kernel
    # (the in-kernel hardware PRNG is Mosaic-only and breaks interpret mode).
    if noise_z is None or noise_y is None:
        knz, kny = jax.random.split(jax.random.PRNGKey(seed))
        if noise_z is None:
            noise_z = jax.random.uniform(knz, (B, C, HW), jnp.float32, -0.5, 0.5)
        if noise_y is None:
            noise_y = jax.random.uniform(kny, (B, C, HW), jnp.float32, -0.5, 0.5)

    x3 = x.reshape(B, C, HW).astype(jnp.float32)     # free view, no transpose
    nz3 = noise_z.reshape(B, C, HW).astype(jnp.float32)
    ny3 = noise_y.reshape(B, C, HW).astype(jnp.float32)
    if n_pad != HW:                                   # only when HW % 128 != 0
        pad = ((0, 0), (0, 0), (0, n_pad - HW))
        x3 = jnp.pad(x3, pad)
        nz3 = jnp.pad(nz3, pad)
        ny3 = jnp.pad(ny3, pad)

    H2, b2, a2 = _prepare_params(Hm, bm, am)

    grid = (B, n_pad // tile_n)
    data_spec = pl.BlockSpec((None, C, tile_n), lambda i, j: (i, 0, j))
    h_spec = pl.BlockSpec(H2.shape, lambda i, j: (0, 0))
    v_spec = pl.BlockSpec(b2.shape, lambda i, j: (0, 0))

    out_shape = tuple(jax.ShapeDtypeStruct((B, C, n_pad), jnp.float32)
                      for _ in range(3))

    # VMEM request: double-buffered (3 in + 3 out) blocks + in-kernel temporaries,
    # capped well below v7x's 64 MiB per-TC VMEM.
    block_bytes = C * tile_n * 4
    vmem_limit = int(min(48 * 2 ** 20,
                         max(16 * 2 ** 20, 44 * block_bytes + (2 << 20))))

    # EUP-bound kernel: ~24 tanh + ~8 exp/div per element.
    n_elem = B * C * n_pad
    cost = pl.CostEstimate(flops=int(160 * n_elem),
                           transcendentals=int(32 * n_elem),
                           bytes_accessed=int(24 * n_elem))

    kernel = functools.partial(_hyperprior_kernel, tanh_dtype=_tanh_dtype())

    recon3, ylike3, zlike3 = pl.pallas_call(
        kernel,
        grid=grid,
        in_specs=[data_spec, data_spec, data_spec, h_spec, v_spec, v_spec],
        out_specs=(data_spec, data_spec, data_spec),
        out_shape=out_shape,
        compiler_params=pltpu.CompilerParams(
            dimension_semantics=("parallel", "parallel"),
            vmem_limit_bytes=vmem_limit),
        cost_estimate=cost,
    )(x3, nz3, ny3, H2, b2, a2)

    def back(a):   # (B, C, n_pad) -> NCHW
        if n_pad != HW:
            a = a[:, :, :HW]
        return a.reshape(B, C, H, W)

    return back(recon3), (back(ylike3), back(zlike3))


# ------------------------------ pure-JAX reference ---------------------------------
def _ref_logits_cumulative(v, Hm, bm, am):
    x = v[..., None]                                            # (B, C, N, 1)
    for k in range(_NUM_LAYERS):
        f_in, f_out = _DIMS[k], _DIMS[k + 1]
        Hk = jax.nn.softplus(Hm[k, :, :f_out, :f_in])           # (C, fo, fi)
        bk = bm[k, :, :f_out]
        ak = jnp.tanh(am[k, :, :f_out])
        x = jnp.einsum('coi,bcni->bcno', Hk, x) + bk[None, :, None, :]
        if k < _NUM_LAYERS - 1:
            x = x + ak[None, :, None, :] * jnp.tanh(x)
    return x[..., 0]


def reference_forward(x, Hm, bm, am, noise_z, noise_y):
    B, C, H, W = x.shape
    N = H * W
    feats = x.reshape(B, C, N)
    nz = noise_z.reshape(B, C, N)
    ny = noise_y.reshape(B, C, N)

    hyper = jnp.abs(feats)
    z_tilde = hyper + nz
    lo = _ref_logits_cumulative(z_tilde - 0.5, Hm, bm, am)
    up = _ref_logits_cumulative(z_tilde + 0.5, Hm, bm, am)
    z_like = jnp.maximum(jnp.abs(jax.nn.sigmoid(up) - jax.nn.sigmoid(lo)),
                         LIKELIHOOD_BOUND)

    scales = jnp.maximum(z_tilde, SCALE_BOUND)
    y_tilde = feats + ny
    vals = jnp.abs(y_tilde)
    cdf = lambda v: 0.5 * jax.scipy.special.erfc(-v * _INV_SQRT2)
    y_like = jnp.maximum(cdf((0.5 - vals) / scales) - cdf((-0.5 - vals) / scales),
                         LIKELIHOOD_BOUND)

    rs = lambda a: a.reshape(B, C, H, W)
    return rs(y_tilde), (rs(y_like), rs(z_like))


# TODO(synk): compress()/decompress() require arithmetic range coding to byte
# streams, which has no Pallas equivalent; only forward() is implemented.

if __name__ == "__main__":
    key = jax.random.PRNGKey(0)
    kx, kp, kz, ky = jax.random.split(key, 4)

    B, C, H, W = 2, 8, 16, 16      # num_condition = num_priors = C = 8
    x = jax.random.normal(kx, (B, C, H, W), jnp.float32)
    Hm, bm, am = init_entropy_bottleneck_params(C, kp)

    noise_z = jax.random.uniform(kz, (B, C, H * W), jnp.float32, -0.5, 0.5)
    noise_y = jax.random.uniform(ky, (B, C, H * W), jnp.float32, -0.5, 0.5)

    recon, (y_like, z_like) = hyperprior_coder_forward(
        x, Hm, bm, am, seed=1234, noise_z=noise_z, noise_y=noise_y)
    jax.block_until_ready((recon, y_like, z_like))

    assert recon.shape == (B, C, H, W)
    assert y_like.shape == (B, C, H, W)
    assert z_like.shape == (B, C, H, W)
    assert bool(jnp.all(jnp.isfinite(recon)))
    assert bool(jnp.all(y_like > 0.0)) and bool(jnp.all(z_like > 0.0))
    # reconstructed must equal features + noise with noise in [-0.5, 0.5)
    assert bool(jnp.max(jnp.abs(recon - x)) <= 0.5)

    # Compare against a pure-JAX reference of the same forward pass.
    r_ref, (yl_ref, zl_ref) = reference_forward(x, Hm, bm, am, noise_z, noise_y)
    assert bool(jnp.allclose(recon, r_ref, atol=1e-5, rtol=1e-5))
    assert bool(jnp.allclose(y_like, yl_ref, atol=1e-4, rtol=1e-3))
    assert bool(jnp.allclose(z_like, zl_ref, atol=1e-4, rtol=1e-3))

    print("KERNEL_OK")
</pallas_src>

<mosaic_0001>
module attributes {stable_mosaic.version = 11 : i64} {
  func.func @_hyperprior_kernel(%arg0: i32, %arg1: i32, %arg2: memref<1x8x128xf32, #tpu.memory_space<vmem>>, %arg3: memref<1x8x128xf32, #tpu.memory_space<vmem>>, %arg4: memref<1x8x128xf32, #tpu.memory_space<vmem>>, %arg5: memref<8x45xf32, #tpu.memory_space<vmem>>, %arg6: memref<8x15xf32, #tpu.memory_space<vmem>>, %arg7: memref<8x15xf32, #tpu.memory_space<vmem>>, %arg8: memref<1x8x128xf32, #tpu.memory_space<vmem>>, %arg9: memref<1x8x128xf32, #tpu.memory_space<vmem>>, %arg10: memref<1x8x128xf32, #tpu.memory_space<vmem>>) attributes {dimension_semantics = [#tpu.dimension_semantics<parallel>, #tpu.dimension_semantics<parallel>], iteration_bounds = array<i64: 2, 2>, scalar_prefetch = 0 : i64, scratch_operands = 0 : i64, tpu.core_type = #tpu.core_type<tc>, window_params = [{transform_indices = @transform_0, window_bounds = array<i64: 1, 8, 128>}, {transform_indices = @transform_1, window_bounds = array<i64: 1, 8, 128>}, {transform_indices = @transform_2, window_bounds = array<i64: 1, 8, 128>}, {pipeline_mode = #tpu.pipeline_mode<synchronous>, transform_indices = @transform_3, window_bounds = array<i64: 8, 45>}, {pipeline_mode = #tpu.pipeline_mode<synchronous>, transform_indices = @transform_4, window_bounds = array<i64: 8, 15>}, {pipeline_mode = #tpu.pipeline_mode<synchronous>, transform_indices = @transform_5, window_bounds = array<i64: 8, 15>}, {transform_indices = @transform_6, window_bounds = array<i64: 1, 8, 128>}, {transform_indices = @transform_7, window_bounds = array<i64: 1, 8, 128>}, {transform_indices = @transform_8, window_bounds = array<i64: 1, 8, 128>}]} {
    %c0 = arith.constant 0 : index
    %c0_0 = arith.constant 0 : index
    %c0_1 = arith.constant 0 : index
    %0 = vector.load %arg2[%c0, %c0_0, %c0_1] : memref<1x8x128xf32, #tpu.memory_space<vmem>>, vector<1x8x128xf32>
    %1 = vector.shape_cast %0 : vector<1x8x128xf32> to vector<8x128xf32>
    %c0_2 = arith.constant 0 : index
    %c0_3 = arith.constant 0 : index
    %c0_4 = arith.constant 0 : index
    %2 = vector.load %arg3[%c0_2, %c0_3, %c0_4] : memref<1x8x128xf32, #tpu.memory_space<vmem>>, vector<1x8x128xf32>
    %3 = vector.shape_cast %2 : vector<1x8x128xf32> to vector<8x128xf32>
    %c0_5 = arith.constant 0 : index
    %c0_6 = arith.constant 0 : index
    %c0_7 = arith.constant 0 : index
    %4 = vector.load %arg4[%c0_5, %c0_6, %c0_7] : memref<1x8x128xf32, #tpu.memory_space<vmem>>, vector<1x8x128xf32>
    %5 = vector.shape_cast %4 : vector<1x8x128xf32> to vector<8x128xf32>
    %c0_8 = arith.constant 0 : index
    %c0_9 = arith.constant 0 : index
    %6 = vector.load %arg5[%c0_8, %c0_9] : memref<8x45xf32, #tpu.memory_space<vmem>>, vector<8x45xf32>
    %c0_10 = arith.constant 0 : index
    %c0_11 = arith.constant 0 : index
    %7 = vector.load %arg6[%c0_10, %c0_11] : memref<8x15xf32, #tpu.memory_space<vmem>>, vector<8x15xf32>
    %c0_12 = arith.constant 0 : index
    %c0_13 = arith.constant 0 : index
    %8 = vector.load %arg7[%c0_12, %c0_13] : memref<8x15xf32, #tpu.memory_space<vmem>>, vector<8x15xf32>
    %9 = math.absf %1 : vector<8x128xf32>
    %10 = arith.addf %9, %3 : vector<8x128xf32>
    %cst = arith.constant 5.000000e-01 : f32
    %11 = vector.broadcast %cst : f32 to vector<8x128xf32>
    %12 = arith.subf %10, %11 : vector<8x128xf32>
    %cst_14 = arith.constant 5.000000e-01 : f32
    %13 = vector.broadcast %cst_14 : f32 to vector<8x128xf32>
    %14 = arith.addf %10, %13 : vector<8x128xf32>
    %15 = vector.shape_cast %12 : vector<8x128xf32> to vector<1x8x128xf32>
    %16 = vector.shape_cast %14 : vector<8x128xf32> to vector<1x8x128xf32>
    %17 = tpu.concatenate %15, %16 in 0 : vector<1x8x128xf32>, vector<1x8x128xf32> -> vector<2x8x128xf32>
    %18 = vector.extract_strided_slice %6 {offsets = [0, 0], sizes = [8, 1], strides = [1, 1]} : vector<8x45xf32> to vector<8x1xf32>
    %19 = vector.shape_cast %18 : vector<8x1xf32> to vector<1x8x1xf32>
    %20 = vector.broadcast %19 : vector<1x8x1xf32> to vector<2x8x128xf32>
    %21 = arith.mulf %20, %17 : vector<2x8x128xf32>
    %22 = vector.extract_strided_slice %7 {offsets = [0, 0], sizes = [8, 1], strides = [1, 1]} : vector<8x15xf32> to vector<8x1xf32>
    %23 = vector.shape_cast %22 : vector<8x1xf32> to vector<1x8x1xf32>
    %24 = vector.broadcast %23 : vector<1x8x1xf32> to vector<2x8x128xf32>
    %25 = arith.addf %21, %24 : vector<2x8x128xf32>
    %26 = math.tanh %25 : vector<2x8x128xf32>
    %27 = vector.extract_strided_slice %8 {offsets = [0, 0], sizes = [8, 1], strides = [1, 1]} : vector<8x15xf32> to vector<8x1xf32>
    %28 = vector.shape_cast %27 : vector<8x1xf32> to vector<1x8x1xf32>
    %29 = vector.broadcast %28 : vector<1x8x1xf32> to vector<2x8x128xf32>
    %30 = arith.mulf %29, %26 : vector<2x8x128xf32>
    %31 = arith.addf %25, %30 : vector<2x8x128xf32>
    %32 = vector.extract_strided_slice %6 {offsets = [0, 3], sizes = [8, 1], strides = [1, 1]} : vector<8x45xf32> to vector<8x1xf32>
    %33 = vector.shape_cast %32 : vector<8x1xf32> to vector<1x8x1xf32>
    %34 = vector.broadcast %33 : vector<1x8x1xf32> to vector<2x8x128xf32>
    %35 = arith.mulf %34, %17 : vector<2x8x128xf32>
    %36 = vector.extract_strided_slice %7 {offsets = [0, 1], sizes = [8, 1], strides = [1, 1]} : vector<8x15xf32> to vector<8x1xf32>
    %37 = vector.shape_cast %36 : vector<8x1xf32> to vector<1x8x1xf32>
    %38 = vector.broadcast %37 : vector<1x8x1xf32> to vector<2x8x128xf32>
    %39 = arith.addf %35, %38 : vector<2x8x128xf32>
    %40 = math.tanh %39 : vector<2x8x128xf32>
    %41 = vector.extract_strided_slice %8 {offsets = [0, 1], sizes = [8, 1], strides = [1, 1]} : vector<8x15xf32> to vector<8x1xf32>
    %42 = vector.shape_cast %41 : vector<8x1xf32> to vector<1x8x1xf32>
    %43 = vector.broadcast %42 : vector<1x8x1xf32> to vector<2x8x128xf32>
    %44 = arith.mulf %43, %40 : vector<2x8x128xf32>
    %45 = arith.addf %39, %44 : vector<2x8x128xf32>
    %46 = vector.extract_strided_slice %6 {offsets = [0, 6], sizes = [8, 1], strides = [1, 1]} : vector<8x45xf32> to vector<8x1xf32>
    %47 = vector.shape_cast %46 : vector<8x1xf32> to vector<1x8x1xf32>
    %48 = vector.broadcast %47 : vector<1x8x1xf32> to vector<2x8x128xf32>
    %49 = arith.mulf %48, %17 : vector<2x8x128xf32>
    %50 = vector.extract_strided_slice %7 {offsets = [0, 2], sizes = [8, 1], strides = [1, 1]} : vector<8x15xf32> to vector<8x1xf32>
    %51 = vector.shape_cast %50 : vector<8x1xf32> to vector<1x8x1xf32>
    %52 = vector.broadcast %51 : vector<1x8x1xf32> to vector<2x8x128xf32>
    %53 = arith.addf %49, %52 : vector<2x8x128xf32>
    %54 = math.tanh %53 : vector<2x8x128xf32>
    %55 = vector.extract_strided_slice %8 {offsets = [0, 2], sizes = [8, 1], strides = [1, 1]} : vector<8x15xf32> to vector<8x1xf32>
    %56 = vector.shape_cast %55 : vector<8x1xf32> to vector<1x8x1xf32>
    %57 = vector.broadcast %56 : vector<1x8x1xf32> to vector<2x8x128xf32>
    %58 = arith.mulf %57, %54 : vector<2x8x128xf32>
    %59 = arith.addf %53, %58 : vector<2x8x128xf32>
    %60 = vector.extract_strided_slice %6 {offsets = [0, 9], sizes = [8, 1], strides = [1, 1]} : vector<8x45xf32> to vector<8x1xf32>
    %61 = vector.shape_cast %60 : vector<8x1xf32> to vector<1x8x1xf32>
    %62 = vector.broadcast %61 : vector<1x8x1xf32> to vector<2x8x128xf32>
    %63 = arith.mulf %62, %31 : vector<2x8x128xf32>
    %64 = vector.extract_strided_slice %6 {offsets = [0, 10], sizes = [8, 1], strides = [1, 1]} : vector<8x45xf32> to vector<8x1xf32>
    %65 = vector.shape_cast %64 : vector<8x1xf32> to vector<1x8x1xf32>
    %66 = vector.broadcast %65 : vector<1x8x1xf32> to vector<2x8x128xf32>
    %67 = arith.mulf %66, %45 : vector<2x8x128xf32>
    %68 = arith.addf %63, %67 : vector<2x8x128xf32>
    %69 = vector.extract_strided_slice %6 {offsets = [0, 11], sizes = [8, 1], strides = [1, 1]} : vector<8x45xf32> to vector<8x1xf32>
    %70 = vector.shape_cast %69 : vector<8x1xf32> to vector<1x8x1xf32>
    %71 = vector.broadcast %70 : vector<1x8x1xf32> to vector<2x8x128xf32>
    %72 = arith.mulf %71, %59 : vector<2x8x128xf32>
    %73 = arith.addf %68, %72 : vector<2x8x128xf32>
    %74 = vector.extract_strided_slice %7 {offsets = [0, 3], sizes = [8, 1], strides = [1, 1]} : vector<8x15xf32> to vector<8x1xf32>
    %75 = vector.shape_cast %74 : vector<8x1xf32> to vector<1x8x1xf32>
    %76 = vector.broadcast %75 : vector<1x8x1xf32> to vector<2x8x128xf32>
    %77 = arith.addf %73, %76 : vector<2x8x128xf32>
    %78 = math.tanh %77 : vector<2x8x128xf32>
    %79 = vector.extract_strided_slice %8 {offsets = [0, 3], sizes = [8, 1], strides = [1, 1]} : vector<8x15xf32> to vector<8x1xf32>
    %80 = vector.shape_cast %79 : vector<8x1xf32> to vector<1x8x1xf32>
    %81 = vector.broadcast %80 : vector<1x8x1xf32> to vector<2x8x128xf32>
    %82 = arith.mulf %81, %78 : vector<2x8x128xf32>
    %83 = arith.addf %77, %82 : vector<2x8x128xf32>
    %84 = vector.extract_strided_slice %6 {offsets = [0, 12], sizes = [8, 1], strides = [1, 1]} : vector<8x45xf32> to vector<8x1xf32>
    %85 = vector.shape_cast %84 : vector<8x1xf32> to vector<1x8x1xf32>
    %86 = vector.broadcast %85 : vector<1x8x1xf32> to vector<2x8x128xf32>
    %87 = arith.mulf %86, %31 : vector<2x8x128xf32>
    %88 = vector.extract_strided_slice %6 {offsets = [0, 13], sizes = [8, 1], strides = [1, 1]} : vector<8x45xf32> to vector<8x1xf32>
    %89 = vector.shape_cast %88 : vector<8x1xf32> to vector<1x8x1xf32>
    %90 = vector.broadcast %89 : vector<1x8x1xf32> to vector<2x8x128xf32>
    %91 = arith.mulf %90, %45 : vector<2x8x128xf32>
    %92 = arith.addf %87, %91 : vector<2x8x128xf32>
    %93 = vector.extract_strided_slice %6 {offsets = [0, 14], sizes = [8, 1], strides = [1, 1]} : vector<8x45xf32> to vector<8x1xf32>
    %94 = vector.shape_cast %93 : vector<8x1xf32> to vector<1x8x1xf32>
    %95 = vector.broadcast %94 : vector<1x8x1xf32> to vector<2x8x128xf32>
    %96 = arith.mulf %95, %59 : vector<2x8x128xf32>
    %97 = arith.addf %92, %96 : vector<2x8x128xf32>
    %98 = vector.extract_strided_slice %7 {offsets = [0, 4], sizes = [8, 1], strides = [1, 1]} : vector<8x15xf32> to vector<8x1xf32>
    %99 = vector.shape_cast %98 : vector<8x1xf32> to vector<1x8x1xf32>
    %100 = vector.broadcast %99 : vector<1x8x1xf32> to vector<2x8x128xf32>
    %101 = arith.addf %97, %100 : vector<2x8x128xf32>
    %102 = math.tanh %101 : vector<2x8x128xf32>
    %103 = vector.extract_strided_slice %8 {offsets = [0, 4], sizes = [8, 1], strides = [1, 1]} : vector<8x15xf32> to vector<8x1xf32>
    %104 = vector.shape_cast %103 : vector<8x1xf32> to vector<1x8x1xf32>
    %105 = vector.broadcast %104 : vector<1x8x1xf32> to vector<2x8x128xf32>
    %106 = arith.mulf %105, %102 : vector<2x8x128xf32>
    %107 = arith.addf %101, %106 : vector<2x8x128xf32>
    %108 = vector.extract_strided_slice %6 {offsets = [0, 15], sizes = [8, 1], strides = [1, 1]} : vector<8x45xf32> to vector<8x1xf32>
    %109 = vector.shape_cast %108 : vector<8x1xf32> to vector<1x8x1xf32>
    %110 = vector.broadcast %109 : vector<1x8x1xf32> to vector<2x8x128xf32>
    %111 = arith.mulf %110, %31 : vector<2x8x128xf32>
    %112 = vector.extract_strided_slice %6 {offsets = [0, 16], sizes = [8, 1], strides = [1, 1]} : vector<8x45xf32> to vector<8x1xf32>
    %113 = vector.shape_cast %112 : vector<8x1xf32> to vector<1x8x1xf32>
    %114 = vector.broadcast %113 : vector<1x8x1xf32> to vector<2x8x128xf32>
    %115 = arith.mulf %114, %45 : vector<2x8x128xf32>
    %116 = arith.addf %111, %115 : vector<2x8x128xf32>
    %117 = vector.extract_strided_slice %6 {offsets = [0, 17], sizes = [8, 1], strides = [1, 1]} : vector<8x45xf32> to vector<8x1xf32>
    %118 = vector.shape_cast %117 : vector<8x1xf32> to vector<1x8x1xf32>
    %119 = vector.broadcast %118 : vector<1x8x1xf32> to vector<2x8x128xf32>
    %120 = arith.mulf %119, %59 : vector<2x8x128xf32>
    %121 = arith.addf %116, %120 : vector<2x8x128xf32>
    %122 = vector.extract_strided_slice %7 {offsets = [0, 5], sizes = [8, 1], strides = [1, 1]} : vector<8x15xf32> to vector<8x1xf32>
    %123 = vector.shape_cast %122 : vector<8x1xf32> to vector<1x8x1xf32>
    %124 = vector.broadcast %123 : vector<1x8x1xf32> to vector<2x8x128xf32>
    %125 = arith.addf %121, %124 : vector<2x8x128xf32>
    %126 = math.tanh %125 : vector<2x8x128xf32>
    %127 = vector.extract_strided_slice %8 {offsets = [0, 5], sizes = [8, 1], strides = [1, 1]} : vector<8x15xf32> to vector<8x1xf32>
    %128 = vector.shape_cast %127 : vector<8x1xf32> to vector<1x8x1xf32>
    %129 = vector.broadcast %128 : vector<1x8x1xf32> to vector<2x8x128xf32>
    %130 = arith.mulf %129, %126 : vector<2x8x128xf32>
    %131 = arith.addf %125, %130 : vector<2x8x128xf32>
    %132 = vector.extract_strided_slice %6 {offsets = [0, 18], sizes = [8, 1], strides = [1, 1]} : vector<8x45xf32> to vector<8x1xf32>
    %133 = vector.shape_cast %132 : vector<8x1xf32> to vector<1x8x1xf32>
    %134 = vector.broadcast %133 : vector<1x8x1xf32> to vector<2x8x128xf32>
    %135 = arith.mulf %134, %83 : vector<2x8x128xf32>
    %136 = vector.extract_strided_slice %6 {offsets = [0, 19], sizes = [8, 1], strides = [1, 1]} : vector<8x45xf32> to vector<8x1xf32>
    %137 = vector.shape_cast %136 : vector<8x1xf32> to vector<1x8x1xf32>
    %138 = vector.broadcast %137 : vector<1x8x1xf32> to vector<2x8x128xf32>
    %139 = arith.mulf %138, %107 : vector<2x8x128xf32>
    %140 = arith.addf %135, %139 : vector<2x8x128xf32>
    %141 = vector.extract_strided_slice %6 {offsets = [0, 20], sizes = [8, 1], strides = [1, 1]} : vector<8x45xf32> to vector<8x1xf32>
    %142 = vector.shape_cast %141 : vector<8x1xf32> to vector<1x8x1xf32>
    %143 = vector.broadcast %142 : vector<1x8x1xf32> to vector<2x8x128xf32>
    %144 = arith.mulf %143, %131 : vector<2x8x128xf32>
    %145 = arith.addf %140, %144 : vector<2x8x128xf32>
    %146 = vector.extract_strided_slice %7 {offsets = [0, 6], sizes = [8, 1], strides = [1, 1]} : vector<8x15xf32> to vector<8x1xf32>
    %147 = vector.shape_cast %146 : vector<8x1xf32> to vector<1x8x1xf32>
    %148 = vector.broadcast %147 : vector<1x8x1xf32> to vector<2x8x128xf32>
    %149 = arith.addf %145, %148 : vector<2x8x128xf32>
    %150 = math.tanh %149 : vector<2x8x128xf32>
    %151 = vector.extract_strided_slice %8 {offsets = [0, 6], sizes = [8, 1], strides = [1, 1]} : vector<8x15xf32> to vector<8x1xf32>
    %152 = vector.shape_cast %151 : vector<8x1xf32> to vector<1x8x1xf32>
    %153 = vector.broadcast %152 : vector<1x8x1xf32> to vector<2x8x128xf32>
    %154 = arith.mulf %153, %150 : vector<2x8x128xf32>
    %155 = arith.addf %149, %154 : vector<2x8x128xf32>
    %156 = vector.extract_strided_slice %6 {offsets = [0, 21], sizes = [8, 1], strides = [1, 1]} : vector<8x45xf32> to vector<8x1xf32>
    %157 = vector.shape_cast %156 : vector<8x1xf32> to vector<1x8x1xf32>
    %158 = vector.broadcast %157 : vector<1x8x1xf32> to vector<2x8x128xf32>
    %159 = arith.mulf %158, %83 : vector<2x8x128xf32>
    %160 = vector.extract_strided_slice %6 {offsets = [0, 22], sizes = [8, 1], strides = [1, 1]} : vector<8x45xf32> to vector<8x1xf32>
    %161 = vector.shape_cast %160 : vector<8x1xf32> to vector<1x8x1xf32>
    %162 = vector.broadcast %161 : vector<1x8x1xf32> to vector<2x8x128xf32>
    %163 = arith.mulf %162, %107 : vector<2x8x128xf32>
    %164 = arith.addf %159, %163 : vector<2x8x128xf32>
    %165 = vector.extract_strided_slice %6 {offsets = [0, 23], sizes = [8, 1], strides = [1, 1]} : vector<8x45xf32> to vector<8x1xf32>
    %166 = vector.shape_cast %165 : vector<8x1xf32> to vector<1x8x1xf32>
    %167 = vector.broadcast %166 : vector<1x8x1xf32> to vector<2x8x128xf32>
    %168 = arith.mulf %167, %131 : vector<2x8x128xf32>
    %169 = arith.addf %164, %168 : vector<2x8x128xf32>
    %170 = vector.extract_strided_slice %7 {offsets = [0, 7], sizes = [8, 1], strides = [1, 1]} : vector<8x15xf32> to vector<8x1xf32>
    %171 = vector.shape_cast %170 : vector<8x1xf32> to vector<1x8x1xf32>
    %172 = vector.broadcast %171 : vector<1x8x1xf32> to vector<2x8x128xf32>
    %173 = arith.addf %169, %172 : vector<2x8x128xf32>
    %174 = math.tanh %173 : vector<2x8x128xf32>
    %175 = vector.extract_strided_slice %8 {offsets = [0, 7], sizes = [8, 1], strides = [1, 1]} : vector<8x15xf32> to vector<8x1xf32>
    %176 = vector.shape_cast %175 : vector<8x1xf32> to vector<1x8x1xf32>
    %177 = vector.broadcast %176 : vector<1x8x1xf32> to vector<2x8x128xf32>
    %178 = arith.mulf %177, %174 : vector<2x8x128xf32>
    %179 = arith.addf %173, %178 : vector<2x8x128xf32>
    %180 = vector.extract_strided_slice %6 {offsets = [0, 24], sizes = [8, 1], strides = [1, 1]} : vector<8x45xf32> to vector<8x1xf32>
    %181 = vector.shape_cast %180 : vector<8x1xf32> to vector<1x8x1xf32>
    %182 = vector.broadcast %181 : vector<1x8x1xf32> to vector<2x8x128xf32>
    %183 = arith.mulf %182, %83 : vector<2x8x128xf32>
    %184 = vector.extract_strided_slice %6 {offsets = [0, 25], sizes = [8, 1], strides = [1, 1]} : vector<8x45xf32> to vector<8x1xf32>
    %185 = vector.shape_cast %184 : vector<8x1xf32> to vector<1x8x1xf32>
    %186 = vector.broadcast %185 : vector<1x8x1xf32> to vector<2x8x128xf32>
    %187 = arith.mulf %186, %107 : vector<2x8x128xf32>
    %188 = arith.addf %183, %187 : vector<2x8x128xf32>
    %189 = vector.extract_strided_slice %6 {offsets = [0, 26], sizes = [8, 1], strides = [1, 1]} : vector<8x45xf32> to vector<8x1xf32>
    %190 = vector.shape_cast %189 : vector<8x1xf32> to vector<1x8x1xf32>
    %191 = vector.broadcast %190 : vector<1x8x1xf32> to vector<2x8x128xf32>
    %192 = arith.mulf %191, %131 : vector<2x8x128xf32>
    %193 = arith.addf %188, %192 : vector<2x8x128xf32>
    %194 = vector.extract_strided_slice %7 {offsets = [0, 8], sizes = [8, 1], strides = [1, 1]} : vector<8x15xf32> to vector<8x1xf32>
    %195 = vector.shape_cast %194 : vector<8x1xf32> to vector<1x8x1xf32>
    %196 = vector.broadcast %195 : vector<1x8x1xf32> to vector<2x8x128xf32>
    %197 = arith.addf %193, %196 : vector<2x8x128xf32>
    %198 = math.tanh %197 : vector<2x8x128xf32>
    %199 = vector.extract_strided_slice %8 {offsets = [0, 8], sizes = [8, 1], strides = [1, 1]} : vector<8x15xf32> to vector<8x1xf32>
    %200 = vector.shape_cast %199 : vector<8x1xf32> to vector<1x8x1xf32>
    %201 = vector.broadcast %200 : vector<1x8x1xf32> to vector<2x8x128xf32>
    %202 = arith.mulf %201, %198 : vector<2x8x128xf32>
    %203 = arith.addf %197, %202 : vector<2x8x128xf32>
    %204 = vector.extract_strided_slice %6 {offsets = [0, 27], sizes = [8, 1], strides = [1, 1]} : vector<8x45xf32> to vector<8x1xf32>
    %205 = vector.shape_cast %204 : vector<8x1xf32> to vector<1x8x1xf32>
    %206 = vector.broadcast %205 : vector<1x8x1xf32> to vector<2x8x128xf32>
    %207 = arith.mulf %206, %155 : vector<2x8x128xf32>
    %208 = vector.extract_strided_slice %6 {offsets = [0, 28], sizes = [8, 1], strides = [1, 1]} : vector<8x45xf32> to vector<8x1xf32>
    %209 = vector.shape_cast %208 : vector<8x1xf32> to vector<1x8x1xf32>
    %210 = vector.broadcast %209 : vector<1x8x1xf32> to vector<2x8x128xf32>
    %211 = arith.mulf %210, %179 : vector<2x8x128xf32>
    %212 = arith.addf %207, %211 : vector<2x8x128xf32>
    %213 = vector.extract_strided_slice %6 {offsets = [0, 29], sizes = [8, 1], strides = [1, 1]} : vector<8x45xf32> to vector<8x1xf32>
    %214 = vector.shape_cast %213 : vector<8x1xf32> to vector<1x8x1xf32>
    %215 = vector.broadcast %214 : vector<1x8x1xf32> to vector<2x8x128xf32>
    %216 = arith.mulf %215, %203 : vector<2x8x128xf32>
    %217 = arith.addf %212, %216 : vector<2x8x128xf32>
    %218 = vector.extract_strided_slice %7 {offsets = [0, 9], sizes = [8, 1], strides = [1, 1]} : vector<8x15xf32> to vector<8x1xf32>
    %219 = vector.shape_cast %218 : vector<8x1xf32> to vector<1x8x1xf32>
    %220 = vector.broadcast %219 : vector<1x8x1xf32> to vector<2x8x128xf32>
    %221 = arith.addf %217, %220 : vector<2x8x128xf32>
    %222 = math.tanh %221 : vector<2x8x128xf32>
    %223 = vector.extract_strided_slice %8 {offsets = [0, 9], sizes = [8, 1], strides = [1, 1]} : vector<8x15xf32> to vector<8x1xf32>
    %224 = vector.shape_cast %223 : vector<8x1xf32> to vector<1x8x1xf32>
    %225 = vector.broadcast %224 : vector<1x8x1xf32> to vector<2x8x128xf32>
    %226 = arith.mulf %225, %222 : vector<2x8x128xf32>
    %227 = arith.addf %221, %226 : vector<2x8x128xf32>
    %228 = vector.extract_strided_slice %6 {offsets = [0, 30], sizes = [8, 1], strides = [1, 1]} : vector<8x45xf32> to vector<8x1xf32>
    %229 = vector.shape_cast %228 : vector<8x1xf32> to vector<1x8x1xf32>
    %230 = vector.broadcast %229 : vector<1x8x1xf32> to vector<2x8x128xf32>
    %231 = arith.mulf %230, %155 : vector<2x8x128xf32>
    %232 = vector.extract_strided_slice %6 {offsets = [0, 31], sizes = [8, 1], strides = [1, 1]} : vector<8x45xf32> to vector<8x1xf32>
    %233 = vector.shape_cast %232 : vector<8x1xf32> to vector<1x8x1xf32>
    %234 = vector.broadcast %233 : vector<1x8x1xf32> to vector<2x8x128xf32>
    %235 = arith.mulf %234, %179 : vector<2x8x128xf32>
    %236 = arith.addf %231, %235 : vector<2x8x128xf32>
    %237 = vector.extract_strided_slice %6 {offsets = [0, 32], sizes = [8, 1], strides = [1, 1]} : vector<8x45xf32> to vector<8x1xf32>
    %238 = vector.shape_cast %237 : vector<8x1xf32> to vector<1x8x1xf32>
    %239 = vector.broadcast %238 : vector<1x8x1xf32> to vector<2x8x128xf32>
    %240 = arith.mulf %239, %203 : vector<2x8x128xf32>
    %241 = arith.addf %236, %240 : vector<2x8x128xf32>
    %242 = vector.extract_strided_slice %7 {offsets = [0, 10], sizes = [8, 1], strides = [1, 1]} : vector<8x15xf32> to vector<8x1xf32>
    %243 = vector.shape_cast %242 : vector<8x1xf32> to vector<1x8x1xf32>
    %244 = vector.broadcast %243 : vector<1x8x1xf32> to vector<2x8x128xf32>
    %245 = arith.addf %241, %244 : vector<2x8x128xf32>
    %246 = math.tanh %245 : vector<2x8x128xf32>
    %247 = vector.extract_strided_slice %8 {offsets = [0, 10], sizes = [8, 1], strides = [1, 1]} : vector<8x15xf32> to vector<8x1xf32>
    %248 = vector.shape_cast %247 : vector<8x1xf32> to vector<1x8x1xf32>
    %249 = vector.broadcast %248 : vector<1x8x1xf32> to vector<2x8x128xf32>
    %250 = arith.mulf %249, %246 : vector<2x8x128xf32>
    %251 = arith.addf %245, %250 : vector<2x8x128xf32>
    %252 = vector.extract_strided_slice %6 {offsets = [0, 33], sizes = [8, 1], strides = [1, 1]} : vector<8x45xf32> to vector<8x1xf32>
    %253 = vector.shape_cast %252 : vector<8x1xf32> to vector<1x8x1xf32>
    %254 = vector.broadcast %253 : vector<1x8x1xf32> to vector<2x8x128xf32>
    %255 = arith.mulf %254, %155 : vector<2x8x128xf32>
    %256 = vector.extract_strided_slice %6 {offsets = [0, 34], sizes = [8, 1], strides = [1, 1]} : vector<8x45xf32> to vector<8x1xf32>
    %257 = vector.shape_cast %256 : vector<8x1xf32> to vector<1x8x1xf32>
    %258 = vector.broadcast %257 : vector<1x8x1xf32> to vector<2x8x128xf32>
    %259 = arith.mulf %258, %179 : vector<2x8x128xf32>
    %260 = arith.addf %255, %259 : vector<2x8x128xf32>
    %261 = vector.extract_strided_slice %6 {offsets = [0, 35], sizes = [8, 1], strides = [1, 1]} : vector<8x45xf32> to vector<8x1xf32>
    %262 = vector.shape_cast %261 : vector<8x1xf32> to vector<1x8x1xf32>
    %263 = vector.broadcast %262 : vector<1x8x1xf32> to vector<2x8x128xf32>
    %264 = arith.mulf %263, %203 : vector<2x8x128xf32>
    %265 = arith.addf %260, %264 : vector<2x8x128xf32>
    %266 = vector.extract_strided_slice %7 {offsets = [0, 11], sizes = [8, 1], strides = [1, 1]} : vector<8x15xf32> to vector<8x1xf32>
    %267 = vector.shape_cast %266 : vector<8x1xf32> to vector<1x8x1xf32>
    %268 = vector.broadcast %267 : vector<1x8x1xf32> to vector<2x8x128xf32>
    %269 = arith.addf %265, %268 : vector<2x8x128xf32>
    %270 = math.tanh %269 : vector<2x8x128xf32>
    %271 = vector.extract_strided_slice %8 {offsets = [0, 11], sizes = [8, 1], strides = [1, 1]} : vector<8x15xf32> to vector<8x1xf32>
    %272 = vector.shape_cast %271 : vector<8x1xf32> to vector<1x8x1xf32>
    %273 = vector.broadcast %272 : vector<1x8x1xf32> to vector<2x8x128xf32>
    %274 = arith.mulf %273, %270 : vector<2x8x128xf32>
    %275 = arith.addf %269, %274 : vector<2x8x128xf32>
    %276 = vector.extract_strided_slice %6 {offsets = [0, 36], sizes = [8, 1], strides = [1, 1]} : vector<8x45xf32> to vector<8x1xf32>
    %277 = vector.shape_cast %276 : vector<8x1xf32> to vector<1x8x1xf32>
    %278 = vector.broadcast %277 : vector<1x8x1xf32> to vector<2x8x128xf32>
    %279 = arith.mulf %278, %227 : vector<2x8x128xf32>
    %280 = vector.extract_strided_slice %6 {offsets = [0, 37], sizes = [8, 1], strides = [1, 1]} : vector<8x45xf32> to vector<8x1xf32>
    %281 = vector.shape_cast %280 : vector<8x1xf32> to vector<1x8x1xf32>
    %282 = vector.broadcast %281 : vector<1x8x1xf32> to vector<2x8x128xf32>
    %283 = arith.mulf %282, %251 : vector<2x8x128xf32>
    %284 = arith.addf %279, %283 : vector<2x8x128xf32>
    %285 = vector.extract_strided_slice %6 {offsets = [0, 38], sizes = [8, 1], strides = [1, 1]} : vector<8x45xf32> to vector<8x1xf32>
    %286 = vector.shape_cast %285 : vector<8x1xf32> to vector<1x8x1xf32>
    %287 = vector.broadcast %286 : vector<1x8x1xf32> to vector<2x8x128xf32>
    %288 = arith.mulf %287, %275 : vector<2x8x128xf32>
    %289 = arith.addf %284, %288 : vector<2x8x128xf32>
    %290 = vector.extract_strided_slice %7 {offsets = [0, 12], sizes = [8, 1], strides = [1, 1]} : vector<8x15xf32> to vector<8x1xf32>
    %291 = vector.shape_cast %290 : vector<8x1xf32> to vector<1x8x1xf32>
    %292 = vector.broadcast %291 : vector<1x8x1xf32> to vector<2x8x128xf32>
    %293 = arith.addf %289, %292 : vector<2x8x128xf32>
    %294 = vector.extract_strided_slice %293 {offsets = [0, 0, 0], sizes = [1, 8, 128], strides = [1, 1, 1]} : vector<2x8x128xf32> to vector<1x8x128xf32>
    %295 = vector.shape_cast %294 : vector<1x8x128xf32> to vector<8x128xf32>
    %296 = vector.extract_strided_slice %293 {offsets = [1, 0, 0], sizes = [1, 8, 128], strides = [1, 1, 1]} : vector<2x8x128xf32> to vector<1x8x128xf32>
    %297 = vector.shape_cast %296 : vector<1x8x128xf32> to vector<8x128xf32>
    %298 = arith.addf %295, %297 : vector<8x128xf32>
    %cst_15 = arith.constant 0.000000e+00 : f32
    %299 = vector.broadcast %cst_15 : f32 to vector<8x128xf32>
    %300 = arith.cmpf olt, %298, %299 : vector<8x128xf32>
    %cst_16 = arith.constant 1.000000e+00 : f32
    %cst_17 = arith.constant -1.000000e+00 : f32
    %301 = vector.broadcast %cst_16 : f32 to vector<8x128xf32>
    %302 = vector.broadcast %cst_17 : f32 to vector<8x128xf32>
    %303 = arith.select %300, %301, %302 : vector<8x128xi1>, vector<8x128xf32>
    %304 = arith.mulf %303, %297 : vector<8x128xf32>
    %cst_18 = arith.constant -6.000000e+01 : f32
    %cst_19 = arith.constant 6.000000e+01 : f32
    %305 = vector.broadcast %cst_18 : f32 to vector<8x128xf32>
    %306 = arith.maximumf %305, %304 : vector<8x128xf32>
    %307 = vector.broadcast %cst_19 : f32 to vector<8x128xf32>
    %308 = arith.minimumf %307, %306 : vector<8x128xf32>
    %309 = arith.mulf %303, %295 : vector<8x128xf32>
    %cst_20 = arith.constant -6.000000e+01 : f32
    %cst_21 = arith.constant 6.000000e+01 : f32
    %310 = vector.broadcast %cst_20 : f32 to vector<8x128xf32>
    %311 = arith.maximumf %310, %309 : vector<8x128xf32>
    %312 = vector.broadcast %cst_21 : f32 to vector<8x128xf32>
    %313 = arith.minimumf %312, %311 : vector<8x128xf32>
    %314 = math.exp %308 : vector<8x128xf32>
    %315 = math.exp %313 : vector<8x128xf32>
    %316 = arith.subf %314, %315 : vector<8x128xf32>
    %317 = math.absf %316 : vector<8x128xf32>
    %cst_22 = arith.constant 1.000000e+00 : f32
    %318 = vector.broadcast %cst_22 : f32 to vector<8x128xf32>
    %319 = arith.addf %318, %314 : vector<8x128xf32>
    %cst_23 = arith.constant 1.000000e+00 : f32
    %320 = vector.broadcast %cst_23 : f32 to vector<8x128xf32>
    %321 = arith.addf %320, %315 : vector<8x128xf32>
    %322 = arith.mulf %319, %321 : vector<8x128xf32>
    %323 = arith.divf %317, %322 : vector<8x128xf32>
    %cst_24 = arith.constant 9.99999971E-10 : f32
    %324 = vector.broadcast %cst_24 : f32 to vector<8x128xf32>
    %325 = arith.maximumf %323, %324 : vector<8x128xf32>
    %cst_25 = arith.constant 1.100000e-01 : f32
    %326 = vector.broadcast %cst_25 : f32 to vector<8x128xf32>
    %327 = arith.maximumf %10, %326 : vector<8x128xf32>
    %328 = arith.addf %1, %5 : vector<8x128xf32>
    %329 = math.absf %328 : vector<8x128xf32>
    %cst_26 = arith.constant 0.707106769 : f32
    %330 = vector.broadcast %cst_26 : f32 to vector<8x128xf32>
    %331 = arith.divf %330, %327 : vector<8x128xf32>
    %cst_27 = arith.constant 5.000000e-01 : f32
    %332 = vector.broadcast %cst_27 : f32 to vector<8x128xf32>
    %333 = arith.subf %329, %332 : vector<8x128xf32>
    %334 = arith.mulf %333, %331 : vector<8x128xf32>
    %335 = math.absf %334 : vector<8x128xf32>
    %cst_28 = arith.constant 0.327591091 : f32
    %336 = vector.broadcast %cst_28 : f32 to vector<8x128xf32>
    %337 = arith.mulf %336, %335 : vector<8x128xf32>
    %cst_29 = arith.constant 1.000000e+00 : f32
    %338 = vector.broadcast %cst_29 : f32 to vector<8x128xf32>
    %339 = arith.addf %338, %337 : vector<8x128xf32>
    %cst_30 = arith.constant 1.000000e+00 : f32
    %340 = vector.broadcast %cst_30 : f32 to vector<8x128xf32>
    %341 = arith.divf %340, %339 : vector<8x128xf32>
    %cst_31 = arith.constant 1.06140542 : f32
    %342 = vector.broadcast %cst_31 : f32 to vector<8x128xf32>
    %343 = arith.mulf %342, %341 : vector<8x128xf32>
    %cst_32 = arith.constant -1.45315206 : f32
    %344 = vector.broadcast %cst_32 : f32 to vector<8x128xf32>
    %345 = arith.addf %343, %344 : vector<8x128xf32>
    %346 = arith.mulf %345, %341 : vector<8x128xf32>
    %cst_33 = arith.constant 1.42141378 : f32
    %347 = vector.broadcast %cst_33 : f32 to vector<8x128xf32>
    %348 = arith.addf %346, %347 : vector<8x128xf32>
    %349 = arith.mulf %348, %341 : vector<8x128xf32>
    %cst_34 = arith.constant -0.284496725 : f32
    %350 = vector.broadcast %cst_34 : f32 to vector<8x128xf32>
    %351 = arith.addf %349, %350 : vector<8x128xf32>
    %352 = arith.mulf %351, %341 : vector<8x128xf32>
    %cst_35 = arith.constant 0.254829586 : f32
    %353 = vector.broadcast %cst_35 : f32 to vector<8x128xf32>
    %354 = arith.addf %352, %353 : vector<8x128xf32>
    %355 = arith.mulf %354, %341 : vector<8x128xf32>
    %cst_36 = arith.constant 5.000000e-01 : f32
    %356 = vector.broadcast %cst_36 : f32 to vector<8x128xf32>
    %357 = arith.mulf %356, %355 : vector<8x128xf32>
    %cst_37 = arith.constant 0.000000e+00 : f32
    %358 = vector.broadcast %cst_37 : f32 to vector<8x128xf32>
    %359 = arith.subf %358, %335 : vector<8x128xf32>
    %360 = arith.mulf %359, %335 : vector<8x128xf32>
    %361 = math.exp %360 : vector<8x128xf32>
    %362 = arith.mulf %357, %361 : vector<8x128xf32>
    %cst_38 = arith.constant 0.000000e+00 : f32
    %363 = vector.broadcast %cst_38 : f32 to vector<8x128xf32>
    %364 = arith.cmpf oge, %334, %363 : vector<8x128xf32>
    %cst_39 = arith.constant 1.000000e+00 : f32
    %365 = vector.broadcast %cst_39 : f32 to vector<8x128xf32>
    %366 = arith.subf %365, %362 : vector<8x128xf32>
    %367 = arith.select %364, %362, %366 : vector<8x128xi1>, vector<8x128xf32>
    %cst_40 = arith.constant 5.000000e-01 : f32
    %368 = vector.broadcast %cst_40 : f32 to vector<8x128xf32>
    %369 = arith.addf %329, %368 : vector<8x128xf32>
    %370 = arith.mulf %369, %331 : vector<8x128xf32>
    %371 = math.absf %370 : vector<8x128xf32>
    %cst_41 = arith.constant 0.327591091 : f32
    %372 = vector.broadcast %cst_41 : f32 to vector<8x128xf32>
    %373 = arith.mulf %372, %371 : vector<8x128xf32>
    %cst_42 = arith.constant 1.000000e+00 : f32
    %374 = vector.broadcast %cst_42 : f32 to vector<8x128xf32>
    %375 = arith.addf %374, %373 : vector<8x128xf32>
    %cst_43 = arith.constant 1.000000e+00 : f32
    %376 = vector.broadcast %cst_43 : f32 to vector<8x128xf32>
    %377 = arith.divf %376, %375 : vector<8x128xf32>
    %cst_44 = arith.constant 1.06140542 : f32
    %378 = vector.broadcast %cst_44 : f32 to vector<8x128xf32>
    %379 = arith.mulf %378, %377 : vector<8x128xf32>
    %cst_45 = arith.constant -1.45315206 : f32
    %380 = vector.broadcast %cst_45 : f32 to vector<8x128xf32>
    %381 = arith.addf %379, %380 : vector<8x128xf32>
    %382 = arith.mulf %381, %377 : vector<8x128xf32>
    %cst_46 = arith.constant 1.42141378 : f32
    %383 = vector.broadcast %cst_46 : f32 to vector<8x128xf32>
    %384 = arith.addf %382, %383 : vector<8x128xf32>
    %385 = arith.mulf %384, %377 : vector<8x128xf32>
    %cst_47 = arith.constant -0.284496725 : f32
    %386 = vector.broadcast %cst_47 : f32 to vector<8x128xf32>
    %387 = arith.addf %385, %386 : vector<8x128xf32>
    %388 = arith.mulf %387, %377 : vector<8x128xf32>
    %cst_48 = arith.constant 0.254829586 : f32
    %389 = vector.broadcast %cst_48 : f32 to vector<8x128xf32>
    %390 = arith.addf %388, %389 : vector<8x128xf32>
    %391 = arith.mulf %390, %377 : vector<8x128xf32>
    %cst_49 = arith.constant 5.000000e-01 : f32
    %392 = vector.broadcast %cst_49 : f32 to vector<8x128xf32>
    %393 = arith.mulf %392, %391 : vector<8x128xf32>
    %cst_50 = arith.constant 0.000000e+00 : f32
    %394 = vector.broadcast %cst_50 : f32 to vector<8x128xf32>
    %395 = arith.subf %394, %371 : vector<8x128xf32>
    %396 = arith.mulf %395, %371 : vector<8x128xf32>
    %397 = math.exp %396 : vector<8x128xf32>
    %398 = arith.mulf %393, %397 : vector<8x128xf32>
    %cst_51 = arith.constant 0.000000e+00 : f32
    %399 = vector.broadcast %cst_51 : f32 to vector<8x128xf32>
    %400 = arith.cmpf oge, %370, %399 : vector<8x128xf32>
    %cst_52 = arith.constant 1.000000e+00 : f32
    %401 = vector.broadcast %cst_52 : f32 to vector<8x128xf32>
    %402 = arith.subf %401, %398 : vector<8x128xf32>
    %403 = arith.select %400, %398, %402 : vector<8x128xi1>, vector<8x128xf32>
    %404 = arith.subf %367, %403 : vector<8x128xf32>
    %cst_53 = arith.constant 9.99999971E-10 : f32
    %405 = vector.broadcast %cst_53 : f32 to vector<8x128xf32>
    %406 = arith.maximumf %404, %405 : vector<8x128xf32>
    %c0_54 = arith.constant 0 : index
    %c0_55 = arith.constant 0 : index
    %c0_56 = arith.constant 0 : index
    %407 = vector.load %arg8[%c0_54, %c0_55, %c0_56] : memref<1x8x128xf32, #tpu.memory_space<vmem>>, vector<1x8x128xf32>
    %408 = vector.shape_cast %407 : vector<1x8x128xf32> to vector<8x128xf32>
    %409 = vector.shape_cast %328 : vector<8x128xf32> to vector<1x8x128xf32>
    tpu.vector_store %arg8[%c0_54, %c0_55, %c0_56], %409 {strides = array<i32>} : memref<1x8x128xf32, #tpu.memory_space<vmem>>, vector<1x8x128xf32>,
    %c0_57 = arith.constant 0 : index
    %c0_58 = arith.constant 0 : index
    %c0_59 = arith.constant 0 : index
    %410 = vector.load %arg9[%c0_57, %c0_58, %c0_59] : memref<1x8x128xf32, #tpu.memory_space<vmem>>, vector<1x8x128xf32>
    %411 = vector.shape_cast %410 : vector<1x8x128xf32> to vector<8x128xf32>
    %412 = vector.shape_cast %406 : vector<8x128xf32> to vector<1x8x128xf32>
    tpu.vector_store %arg9[%c0_57, %c0_58, %c0_59], %412 {strides = array<i32>} : memref<1x8x128xf32, #tpu.memory_space<vmem>>, vector<1x8x128xf32>,
    %c0_60 = arith.constant 0 : index
    %c0_61 = arith.constant 0 : index
    %c0_62 = arith.constant 0 : index
    %413 = vector.load %arg10[%c0_60, %c0_61, %c0_62] : memref<1x8x128xf32, #tpu.memory_space<vmem>>, vector<1x8x128xf32>
    %414 = vector.shape_cast %413 : vector<1x8x128xf32> to vector<8x128xf32>
    %415 = vector.shape_cast %325 : vector<8x128xf32> to vector<1x8x128xf32>
    tpu.vector_store %arg10[%c0_60, %c0_61, %c0_62], %415 {strides = array<i32>} : memref<1x8x128xf32, #tpu.memory_space<vmem>>, vector<1x8x128xf32>,
    return
  }
  func.func @transform_0(%arg0: i32, %arg1: i32) -> (i32, i32, i32) {
    %c0_i32 = arith.constant 0 : i32
    %c0_i32_0 = arith.constant 0 : i32
    return %arg0, %c0_i32, %arg1 : i32, i32, i32
  }
  func.func @transform_1(%arg0: i32, %arg1: i32) -> (i32, i32, i32) {
    %c0_i32 = arith.constant 0 : i32
    %c0_i32_0 = arith.constant 0 : i32
    return %arg0, %c0_i32, %arg1 : i32, i32, i32
  }
  func.func @transform_2(%arg0: i32, %arg1: i32) -> (i32, i32, i32) {
    %c0_i32 = arith.constant 0 : i32
    %c0_i32_0 = arith.constant 0 : i32
    return %arg0, %c0_i32, %arg1 : i32, i32, i32
  }
  func.func @transform_3(%arg0: i32, %arg1: i32) -> (i32, i32) {
    %c0_i32 = arith.constant 0 : i32
    %c0_i32_0 = arith.constant 0 : i32
    %c0_i32_1 = arith.constant 0 : i32
    return %c0_i32, %c0_i32_0 : i32, i32
  }
  func.func @transform_4(%arg0: i32, %arg1: i32) -> (i32, i32) {
    %c0_i32 = arith.constant 0 : i32
    %c0_i32_0 = arith.constant 0 : i32
    %c0_i32_1 = arith.constant 0 : i32
    return %c0_i32, %c0_i32_0 : i32, i32
  }
  func.func @transform_5(%arg0: i32, %arg1: i32) -> (i32, i32) {
    %c0_i32 = arith.constant 0 : i32
    %c0_i32_0 = arith.constant 0 : i32
    %c0_i32_1 = arith.constant 0 : i32
    return %c0_i32, %c0_i32_0 : i32, i32
  }
  func.func @transform_6(%arg0: i32, %arg1: i32) -> (i32, i32, i32) {
    %c0_i32 = arith.constant 0 : i32
    %c0_i32_0 = arith.constant 0 : i32
    return %arg0, %c0_i32, %arg1 : i32, i32, i32
  }
  func.func @transform_7(%arg0: i32, %arg1: i32) -> (i32, i32, i32) {
    %c0_i32 = arith.constant 0 : i32
    %c0_i32_0 = arith.constant 0 : i32
    return %arg0, %c0_i32, %arg1 : i32, i32, i32
  }
  func.func @transform_8(%arg0: i32, %arg1: i32) -> (i32, i32, i32) {
    %c0_i32 = arith.constant 0 : i32
    %c0_i32_0 = arith.constant 0 : i32
    return %arg0, %c0_i32, %arg1 : i32, i32, i32
  }
}

</mosaic_0001>

<llo_original>
// kernel: tpu_custom_call.1
$region0: #{tpu_custom_call.1}
  #allocation0 [shape = 'u32[]', space=smem, size = 0x4, offset = 0x4, fixed_abs, tag = 'smem constant byte address 0x4 - core index']
  #allocation1 [shape = 'u32[144,128]{1,0:T(1,128)}', space=vmem, size = 0x12000, scoped, tag = 'internal scratch']
  %s0 = inlined_call_operand.hbm [shape: f32[2,8,256], index: 0, kind: input, shape index: {}]
  %s1 = inlined_call_operand.hbm [shape: f32[2,8,256], index: 1, kind: input, shape index: {}]
  %s2 = inlined_call_operand.hbm [shape: f32[2,8,256], index: 2, kind: input, shape index: {}]
  %s3 = inlined_call_operand.vmem [shape: f32[8,45], index: 3, kind: input, shape index: {}]
  %s4 = inlined_call_operand.hbm [shape: f32[8,15], index: 4, kind: input, shape index: {}]
  %s5 = inlined_call_operand.vmem [shape: f32[8,15], index: 5, kind: input, shape index: {}]
  %s6 = inlined_call_operand.hbm [shape: f32[2,8,256], index: 6, kind: output, shape index: {0}]
  %s7 = inlined_call_operand.hbm [shape: f32[2,8,256], index: 7, kind: output, shape index: {1}]
  %s8 = inlined_call_operand.hbm [shape: f32[2,8,256], index: 8, kind: output, shape index: {2}]
  %9 = xla_tuple %s6, %s7, %s8
  %s10 = sld [smem:[#allocation0]]
  $region89: #{tpu_custom_call.1} parent=0
    _
  %s12 = ssub.s32 1, %s10
  %s13 = scalar_select 0, %s12, %s10
  $region1: #{tpu_custom_call.1} parent=0
    #allocation2 [shape = 'u8[8192]{0}', space=vmem, size = 0x2000, scoped, tag = 'input window, operand 0']
    #allocation3 [shape = 's32[2]{0}', space=sflag, size = 0x8, scoped, tag = 'scoped memory for tpu_custom_call.1']
    #allocation4 [shape = 's32[2]{0}', space=sflag, size = 0x8, scoped, tag = 'scoped memory for tpu_custom_call.1']
    #allocation5 [shape = 'u8[8192]{0}', space=vmem, size = 0x2000, scoped, tag = 'input window, operand 1']
    #allocation6 [shape = 's32[2]{0}', space=sflag, size = 0x8, scoped, tag = 'scoped memory for tpu_custom_call.1']
    #allocation7 [shape = 'u8[8192]{0}', space=vmem, size = 0x2000, scoped, tag = 'input window, operand 2']
    #allocation8 [shape = 'u8[4096]{0}', space=vmem, size = 0x1000, scoped, tag = 'input window, operand 4, single buffered']
    #allocation9 [shape = 's32[1]{0}', space=sflag, size = 0x4, scoped, tag = 'scoped memory for tpu_custom_call.1']
    #allocation10 [shape = 'u8[8192]{0}', space=vmem, size = 0x2000, scoped, tag = 'output window, operand 0']
    #allocation11 [shape = 'u8[8192]{0}', space=vmem, size = 0x2000, scoped, tag = 'output window, operand 1']
    #allocation12 [shape = 's32[2]{0}', space=sflag, size = 0x8, scoped, tag = 'scoped memory for tpu_custom_call.1']
    #allocation13 [shape = 'u8[8192]{0}', space=vmem, size = 0x2000, scoped, tag = 'output window, operand 2']
    %14 = vsyncpa [#allocation3], 0
    %s15 = scalar_lea.sflag [#allocation3], 1
    %16 = vsyncpa %s15, 0
    %17 = vsyncpa [#allocation6], 0
    %s18 = scalar_lea.sflag [#allocation6], 1
    %19 = vsyncpa %s18, 0
    %20 = vsyncpa [#allocation9], 0
    %21 = vsyncpa [#allocation4], 0
    %s22 = scalar_lea.sflag [#allocation4], 1
    %23 = vsyncpa %s22, 0
    %24 = vsyncpa [#allocation12], 0
    %s25 = scalar_lea.sflag [#allocation12], 1
    %26 = vsyncpa %s25, 0
    loop: start=0, step=1, limit=6
    $region2: #{tpu_custom_call.1} parent=1 // loop_pre_header
      _
    $region3: #{tpu_custom_call.1} parent=1 // loop_header
      %s28 = sphi 0, %s32
      %p29 = scmp.ge.s32.totalorder %s28, 6
      %s35 = sphi 0, %s47
      %s36 = sphi 0, %s43
      %s37 = sphi 0, %s35
      %s38 = sphi 0, %s36
      %s39 = sphi 0, %s37
      %s40 = sphi 0, %s38
      %s52 = sphi 0, %s54
      %s55 = sphi 0, %s52
      %s56 = sphi 0, %s55
      %s72 = sphi 0, %s56
      %s80 = sphi 0, %s82
      %s83 = sphi 0, %s80
      %s84 = sphi 0, %s83
      %s100 = sphi 0, %s84
      %s108 = sphi 0, %s110
      %s111 = sphi 0, %s108
      %s112 = sphi 0, %s111
      %s128 = sphi 0, %s112
      %s132 = sphi 0, %s132
      %s134 = sphi 0, %s132
      %s135 = sphi 0, %s134
      %s149 = sphi 0, %s135
      %s153 = sphi 0, %s153
      %s155 = sphi 0, %s153
      %s156 = sphi 0, %s155
      %s170 = sphi 0, %s156
      %s174 = sphi 0, %s174
      %s176 = sphi 0, %s174
      %s177 = sphi 0, %s176
      %s191 = sphi 0, %s177
      %s199 = sphi 0, %s201
      %s202 = sphi 0, %s199
      %s203 = sphi 0, %s202
      %s219 = sphi 0, %s203
      %s227 = sphi 0, %s229
      %s230 = sphi 0, %s227
      %s231 = sphi 0, %s230
      %s247 = sphi 0, %s231
      %s255 = sphi 0, %s257
      %s258 = sphi 0, %s255
      %s259 = sphi 0, %s258
      %s275 = sphi 0, %s259
    $region4: #{tpu_custom_call.1} parent=1 // loop_header_branch
      %31 = sbr.rel (%p29) target = $region8
    $region5: #{tpu_custom_call.1} parent=1 // loop_body
      %s33 = ssub.s32 %s28, 1
      %s34 = ssub.s32 %s28, 2
      %s41 = sadd.s32 1, %s36
      %p42 = scmp.ge.s32.totalorder %s41, 2
      %s43 = scalar_select %p42, 0, %s41
      %s44 = sadd.s32 1, %s35
      %s45 = scalar_select %p42, %s44, %s35
      %p46 = scmp.ge.s32.totalorder %s45, 2
      %s47 = scalar_select %p46, 0, %s45
      %s48 = ssub.s32 %s35, %s47
      %s49 = ssub.s32 %s36, %s43
      %s50 = sor.u32 %s48, %s49
      %p51 = scmp.eq.s32.totalorder %s50, 0
      %s53 = sadd.s32 %s52, 1
      %s54 = scalar_select %p51, %s52, %s53
      %p57 = pneg %p51
      %p58 = scmp.eq.s32.totalorder %s28, 3
      %p59 = por %p57, %p58
      %p60 = scmp.ne.s32.totalorder %s52, %s55
      %p61 = scmp.eq.s32.totalorder %s28, 0
      %p62 = por %p60, %p61
      %p63 = scmp.ne.s32.totalorder %s52, %s55
      %p64 = scmp.eq.s32.totalorder %s33, 3
      %p65 = por %p63, %p64
      %p66 = scmp.ne.s32.totalorder %s55, %s56
      %p67 = scmp.eq.s32.totalorder %s33, 0
      %p68 = por %p66, %p67
      %p69 = scmp.ne.s32.totalorder %s55, %s56
      %p70 = scmp.eq.s32.totalorder %s34, 3
      %p71 = por %p69, %p70
      %p73 = scmp.ne.s32.totalorder %s56, %s72
      %p74 = scmp.eq.s32.totalorder %s34, 0
      %p75 = por %p73, %p74
      %s76 = ssub.s32 %s35, %s47
      %s77 = ssub.s32 %s36, %s43
      %s78 = sor.u32 %s76, %s77
      %p79 = scmp.eq.s32.totalorder %s78, 0
      %s81 = sadd.s32 %s80, 1
      %s82 = scalar_select %p79, %s80, %s81
      %p85 = pneg %p79
      %p86 = scmp.eq.s32.totalorder %s28, 3
      %p87 = por %p85, %p86
      %p88 = scmp.ne.s32.totalorder %s80, %s83
      %p89 = scmp.eq.s32.totalorder %s28, 0
      %p90 = por %p88, %p89
      %p91 = scmp.ne.s32.totalorder %s80, %s83
      %p92 = scmp.eq.s32.totalorder %s33, 3
      %p93 = por %p91, %p92
      %p94 = scmp.ne.s32.totalorder %s83, %s84
      %p95 = scmp.eq.s32.totalorder %s33, 0
      %p96 = por %p94, %p95
      %p97 = scmp.ne.s32.totalorder %s83, %s84
      %p98 = scmp.eq.s32.totalorder %s34, 3
      %p99 = por %p97, %p98
      %p101 = scmp.ne.s32.totalorder %s84, %s100
      %p102 = scmp.eq.s32.totalorder %s34, 0
      %p103 = por %p101, %p102
      %s104 = ssub.s32 %s35, %s47
      %s105 = ssub.s32 %s36, %s43
      %s106 = sor.u32 %s104, %s105
      %p107 = scmp.eq.s32.totalorder %s106, 0
      %s109 = sadd.s32 %s108, 1
      %s110 = scalar_select %p107, %s108, %s109
      %p113 = pneg %p107
      %p114 = scmp.eq.s32.totalorder %s28, 3
      %p115 = por %p113, %p114
      %p116 = scmp.ne.s32.totalorder %s108, %s111
      %p117 = scmp.eq.s32.totalorder %s28, 0
      %p118 = por %p116, %p117
      %p119 = scmp.ne.s32.totalorder %s108, %s111
      %p120 = scmp.eq.s32.totalorder %s33, 3
      %p121 = por %p119, %p120
      %p122 = scmp.ne.s32.totalorder %s111, %s112
      %p123 = scmp.eq.s32.totalorder %s33, 0
      %p124 = por %p122, %p123
      %p125 = scmp.ne.s32.totalorder %s111, %s112
      %p126 = scmp.eq.s32.totalorder %s34, 3
      %p127 = por %p125, %p126
      %p129 = scmp.ne.s32.totalorder %s112, %s128
      %p130 = scmp.eq.s32.totalorder %s34, 0
      %p131 = por %p129, %p130
      %s133 = sadd.s32 %s132, 1
      %p136 = scmp.eq.s32.totalorder %s28, 3
      %p137 = scmp.ne.s32.totalorder %s132, %s134
      %p138 = scmp.eq.s32.totalorder %s28, 0
      %p139 = por %p137, %p138
      %p140 = scmp.ne.s32.totalorder %s132, %s134
      %p141 = scmp.eq.s32.totalorder %s33, 3
      %p142 = por %p140, %p141
      %p143 = scmp.ne.s32.totalorder %s134, %s135
      %p144 = scmp.eq.s32.totalorder %s33, 0
      %p145 = por %p143, %p144
      %p146 = scmp.ne.s32.totalorder %s134, %s135
      %p147 = scmp.eq.s32.totalorder %s34, 3
      %p148 = por %p146, %p147
      %p150 = scmp.ne.s32.totalorder %s135, %s149
      %p151 = scmp.eq.s32.totalorder %s34, 0
      %p152 = por %p150, %p151
      %s154 = sadd.s32 %s153, 1
      %p157 = scmp.eq.s32.totalorder %s28, 3
      %p158 = scmp.ne.s32.totalorder %s153, %s155
      %p159 = scmp.eq.s32.totalorder %s28, 0
      %p160 = por %p158, %p159
      %p161 = scmp.ne.s32.totalorder %s153, %s155
      %p162 = scmp.eq.s32.totalorder %s33, 3
      %p163 = por %p161, %p162
      %p164 = scmp.ne.s32.totalorder %s155, %s156
      %p165 = scmp.eq.s32.totalorder %s33, 0
      %p166 = por %p164, %p165
      %p167 = scmp.ne.s32.totalorder %s155, %s156
      %p168 = scmp.eq.s32.totalorder %s34, 3
      %p169 = por %p167, %p168
      %p171 = scmp.ne.s32.totalorder %s156, %s170
      %p172 = scmp.eq.s32.totalorder %s34, 0
      %p173 = por %p171, %p172
      %s175 = sadd.s32 %s174, 1
      %p178 = scmp.eq.s32.totalorder %s28, 3
      %p179 = scmp.ne.s32.totalorder %s174, %s176
      %p180 = scmp.eq.s32.totalorder %s28, 0
      %p181 = por %p179, %p180
      %p182 = scmp.ne.s32.totalorder %s174, %s176
      %p183 = scmp.eq.s32.totalorder %s33, 3
      %p184 = por %p182, %p183
      %p185 = scmp.ne.s32.totalorder %s176, %s177
      %p186 = scmp.eq.s32.totalorder %s33, 0
      %p187 = por %p185, %p186
      %p188 = scmp.ne.s32.totalorder %s176, %s177
      %p189 = scmp.eq.s32.totalorder %s34, 3
      %p190 = por %p188, %p189
      %p192 = scmp.ne.s32.totalorder %s177, %s191
      %p193 = scmp.eq.s32.totalorder %s34, 0
      %p194 = por %p192, %p193
      %s195 = ssub.s32 %s35, %s47
      %s196 = ssub.s32 %s36, %s43
      %s197 = sor.u32 %s195, %s196
      %p198 = scmp.eq.s32.totalorder %s197, 0
      %s200 = sadd.s32 %s199, 1
      %s201 = scalar_select %p198, %s199, %s200
      %p204 = pneg %p198
      %p205 = scmp.eq.s32.totalorder %s28, 3
      %p206 = por %p204, %p205
      %p207 = scmp.ne.s32.totalorder %s199, %s202
      %p208 = scmp.eq.s32.totalorder %s28, 0
      %p209 = por %p207, %p208
      %p210 = scmp.ne.s32.totalorder %s199, %s202
      %p211 = scmp.eq.s32.totalorder %s33, 3
      %p212 = por %p210, %p211
      %p213 = scmp.ne.s32.totalorder %s202, %s203
      %p214 = scmp.eq.s32.totalorder %s33, 0
      %p215 = por %p213, %p214
      %p216 = scmp.ne.s32.totalorder %s202, %s203
      %p217 = scmp.eq.s32.totalorder %s34, 3
      %p218 = por %p216, %p217
      %p220 = scmp.ne.s32.totalorder %s203, %s219
      %p221 = scmp.eq.s32.totalorder %s34, 0
      %p222 = por %p220, %p221
      %s223 = ssub.s32 %s35, %s47
      %s224 = ssub.s32 %s36, %s43
      %s225 = sor.u32 %s223, %s224
      %p226 = scmp.eq.s32.totalorder %s225, 0
      %s228 = sadd.s32 %s227, 1
      %s229 = scalar_select %p226, %s227, %s228
      %p232 = pneg %p226
      %p233 = scmp.eq.s32.totalorder %s28, 3
      %p234 = por %p232, %p233
      %p235 = scmp.ne.s32.totalorder %s227, %s230
      %p236 = scmp.eq.s32.totalorder %s28, 0
      %p237 = por %p235, %p236
      %p238 = scmp.ne.s32.totalorder %s227, %s230
      %p239 = scmp.eq.s32.totalorder %s33, 3
      %p240 = por %p238, %p239
      %p241 = scmp.ne.s32.totalorder %s230, %s231
      %p242 = scmp.eq.s32.totalorder %s33, 0
      %p243 = por %p241, %p242
      %p244 = scmp.ne.s32.totalorder %s230, %s231
      %p245 = scmp.eq.s32.totalorder %s34, 3
      %p246 = por %p244, %p245
      %p248 = scmp.ne.s32.totalorder %s231, %s247
      %p249 = scmp.eq.s32.totalorder %s34, 0
      %p250 = por %p248, %p249
      %s251 = ssub.s32 %s35, %s47
      %s252 = ssub.s32 %s36, %s43
      %s253 = sor.u32 %s251, %s252
      %p254 = scmp.eq.s32.totalorder %s253, 0
      %s256 = sadd.s32 %s255, 1
      %s257 = scalar_select %p254, %s255, %s256
      %p260 = pneg %p254
      %p261 = scmp.eq.s32.totalorder %s28, 3
      %p262 = por %p260, %p261
      %p263 = scmp.ne.s32.totalorder %s255, %s258
      %p264 = scmp.eq.s32.totalorder %s28, 0
      %p265 = por %p263, %p264
      %p266 = scmp.ne.s32.totalorder %s255, %s258
      %p267 = scmp.eq.s32.totalorder %s33, 3
      %p268 = por %p266, %p267
      %p269 = scmp.ne.s32.totalorder %s258, %s259
      %p270 = scmp.eq.s32.totalorder %s33, 0
      %p271 = por %p269, %p270
      %p272 = scmp.ne.s32.totalorder %s258, %s259
      %p273 = scmp.eq.s32.totalorder %s34, 3
      %p274 = por %p272, %p273
      %p276 = scmp.ne.s32.totalorder %s259, %s275
      %p277 = scmp.eq.s32.totalorder %s34, 0
      %p278 = por %p276, %p277
      %p279 = scmp.le.s32.totalorder 1, %s28
      %p280 = scmp.lt.s32.totalorder %s28, 5
      %p281 = pnand %p279, %p280
      %p282 = pneg %p281
      // Predicated region
      $region9: #{tpu_custom_call.1} parent=5 // pred_check
        _
      $region10: #{tpu_custom_call.1} parent=5 // pred_check_branch
        %284 = sbr.rel (%p281) target = $region12
      $region11: #{tpu_custom_call.1} parent=5 // pred_region
        %s285 = ssub.s32 %s28, 1
        // Predicated region
        $region13: #{tpu_custom_call.1} parent=11 // pred_check
          %p286 = pneg %p145
        $region14: #{tpu_custom_call.1} parent=11 // pred_check_branch
          %288 = sbr.rel (%p286) target = $region16
        $region15: #{tpu_custom_call.1} parent=11 // pred_region
          _
        $region16: #{tpu_custom_call.1} parent=11 // pred_fallthru
          _
        // Predicated region
        $region17: #{tpu_custom_call.1} parent=11 // pred_check
          %p289 = pneg %p166
        $region18: #{tpu_custom_call.1} parent=11 // pred_check_branch
          %291 = sbr.rel (%p289) target = $region20
        $region19: #{tpu_custom_call.1} parent=11 // pred_region
          %s293 = ssub.s32 128, 128
          %294 = vsyncadd [#allocation9], %s293
          %s296 = sshll.u32 [#allocation8], 4
          %s297 = int_to_ptr.vmem [resolvable:$true] %s296
          %299 = dma.hbm_to_vmem [thread:$0]  %s4, 128, %s297, [#allocation9]
        $region20: #{tpu_custom_call.1} parent=11 // pred_fallthru
          _
        // Predicated region
        $region21: #{tpu_custom_call.1} parent=11 // pred_check
          %p300 = pneg %p187
        $region22: #{tpu_custom_call.1} parent=11 // pred_check_branch
          %302 = sbr.rel (%p300) target = $region24
        $region23: #{tpu_custom_call.1} parent=11 // pred_region
          _
        $region24: #{tpu_custom_call.1} parent=11 // pred_fallthru
          _
      $region12: #{tpu_custom_call.1} parent=5 // pred_fallthru
        _
      %p303 = scmp.lt.s32.totalorder %s28, 4
      // Predicated region
      $region25: #{tpu_custom_call.1} parent=5 // pred_check
        %p304 = pneg %p303
      $region26: #{tpu_custom_call.1} parent=5 // pred_check_branch
        %306 = sbr.rel (%p304) target = $region28
      $region27: #{tpu_custom_call.1} parent=5 // pred_region
        // Predicated region
        $region29: #{tpu_custom_call.1} parent=27 // pred_check
          %p307 = pneg %p62
        $region30: #{tpu_custom_call.1} parent=27 // pred_check_branch
          %309 = sbr.rel (%p307) target = $region32
        $region31: #{tpu_custom_call.1} parent=27 // pred_region
          %s310 = sand.u32 %s52, 1
          %s311 = scalar_lea.sflag [#allocation3], %s310
          %s312 = sand.u32 %s52, 1
          %s313 = smul.addr %s312, 8
          %s314 = scalar_lea.vmem [#allocation2], %s313
          %s316 = ssub.s32 128, 128
          %317 = vsyncadd %s311, %s316
          %s318 = smul.addr %s35, 2
          %s319 = sadd.s32 %s36, %s318
          %s320 = smul.addr %s319, 128
          %s321 = scalar_lea.hbm %s0, %s320
          %s323 = sshll.u32 %s314, 4
          %s324 = int_to_ptr.vmem [resolvable:$true] %s323
          %326 = dma.hbm_to_vmem [thread:$0]  %s321, 128, %s324, %s311
        $region32: #{tpu_custom_call.1} parent=27 // pred_fallthru
          _
        // Predicated region
        $region33: #{tpu_custom_call.1} parent=27 // pred_check
          %p327 = pneg %p90
        $region34: #{tpu_custom_call.1} parent=27 // pred_check_branch
          %329 = sbr.rel (%p327) target = $region36
        $region35: #{tpu_custom_call.1} parent=27 // pred_region
          %s330 = sand.u32 %s28, 1
          %s331 = scalar_lea.sflag [#allocation6], %s330
          %s332 = sand.u32 %s80, 1
          %s333 = smul.addr %s332, 8
          %s334 = scalar_lea.vmem [#allocation5], %s333
          %s336 = ssub.s32 128, 128
          %337 = vsyncadd %s331, %s336
          %s338 = smul.addr %s35, 2
          %s339 = sadd.s32 %s36, %s338
          %s340 = smul.addr %s339, 128
          %s341 = scalar_lea.hbm %s1, %s340
          %s343 = sshll.u32 %s334, 4
          %s344 = int_to_ptr.vmem [resolvable:$true] %s343
          %346 = dma.hbm_to_vmem [thread:$0]  %s341, 128, %s344, %s331
        $region36: #{tpu_custom_call.1} parent=27 // pred_fallthru
          _
        // Predicated region
        $region37: #{tpu_custom_call.1} parent=27 // pred_check
          %p347 = pneg %p118
        $region38: #{tpu_custom_call.1} parent=27 // pred_check_branch
          %349 = sbr.rel (%p347) target = $region40
        $region39: #{tpu_custom_call.1} parent=27 // pred_region
          %s350 = sand.u32 %s28, 1
          %s351 = scalar_lea.sflag [#allocation6], %s350
          %s352 = sand.u32 %s108, 1
          %s353 = smul.addr %s352, 8
          %s354 = scalar_lea.vmem [#allocation7], %s353
          %s356 = ssub.s32 128, 128
          %357 = vsyncadd %s351, %s356
          %s358 = smul.addr %s35, 2
          %s359 = sadd.s32 %s36, %s358
          %s360 = smul.addr %s359, 128
          %s361 = scalar_lea.hbm %s2, %s360
          %s363 = sshll.u32 %s354, 4
          %s364 = int_to_ptr.vmem [resolvable:$true] %s363
          %366 = dma.hbm_to_vmem [thread:$0]  %s361, 128, %s364, %s351
        $region40: #{tpu_custom_call.1} parent=27 // pred_fallthru
          _
      $region28: #{tpu_custom_call.1} parent=5 // pred_fallthru
        _
      %p367 = scmp.le.s32.totalorder 1, %s28
      %p368 = scmp.lt.s32.totalorder %s28, 5
      %p369 = pnand %p367, %p368
      %p370 = pneg %p369
      // Predicated region
      $region41: #{tpu_custom_call.1} parent=5 // pred_check
        _
      $region42: #{tpu_custom_call.1} parent=5 // pred_check_branch
        %372 = sbr.rel (%p369) target = $region44
      $region43: #{tpu_custom_call.1} parent=5 // pred_region
        %s373 = ssub.s32 %s28, 1
        %s374 = sand.u32 %s55, 1
        %s375 = scalar_lea.sflag [#allocation3], %s374
        %s376 = sand.u32 %s55, 1
        %s377 = smul.addr %s376, 8
        %s378 = scalar_lea.vmem [#allocation2], %s377
        // Predicated region
        $region45: #{tpu_custom_call.1} parent=43 // pred_check
          %p379 = pneg %p68
        $region46: #{tpu_custom_call.1} parent=43 // pred_check_branch
          %381 = sbr.rel (%p379) target = $region48
        $region47: #{tpu_custom_call.1} parent=43 // pred_region
          %382 = dma.done %s375, 128
        $region48: #{tpu_custom_call.1} parent=43 // pred_fallthru
          _
        %s383 = sand.u32 %s33, 1
        %s384 = scalar_lea.sflag [#allocation6], %s383
        %s385 = sand.u32 %s83, 1
        %s386 = smul.addr %s385, 8
        %s387 = scalar_lea.vmem [#allocation5], %s386
        // Predicated region
        $region49: #{tpu_custom_call.1} parent=43 // pred_check
          %p388 = pneg %p96
        $region50: #{tpu_custom_call.1} parent=43 // pred_check_branch
          %390 = sbr.rel (%p388) target = $region52
        $region51: #{tpu_custom_call.1} parent=43 // pred_region
          %391 = dma.done %s384, 128
        $region52: #{tpu_custom_call.1} parent=43 // pred_fallthru
          _
        %s392 = sand.u32 %s33, 1
        %s393 = scalar_lea.sflag [#allocation6], %s392
        %s394 = sand.u32 %s111, 1
        %s395 = smul.addr %s394, 8
        %s396 = scalar_lea.vmem [#allocation7], %s395
        // Predicated region
        $region53: #{tpu_custom_call.1} parent=43 // pred_check
          %p397 = pneg %p124
        $region54: #{tpu_custom_call.1} parent=43 // pred_check_branch
          %399 = sbr.rel (%p397) target = $region56
        $region55: #{tpu_custom_call.1} parent=43 // pred_region
          %400 = dma.done %s393, 128
        $region56: #{tpu_custom_call.1} parent=43 // pred_fallthru
          _
        // Predicated region
        $region57: #{tpu_custom_call.1} parent=43 // pred_check
          %p401 = pneg %p166
        $region58: #{tpu_custom_call.1} parent=43 // pred_check_branch
          %403 = sbr.rel (%p401) target = $region60
        $region59: #{tpu_custom_call.1} parent=43 // pred_region
          %404 = dma.done [#allocation9], 128
        $region60: #{tpu_custom_call.1} parent=43 // pred_fallthru
          _
        %s405 = sand.u32 %s55, 1
        %s406 = scalar_lea.sflag [#allocation3], %s405
        %s407 = sand.u32 %s55, 1
        %s408 = smul.addr %s407, 8
        %s409 = scalar_lea.vmem [#allocation2], %s408
        %p410 = pneg %p68
        %p411 = pneg %p65
        %s412 = sand.u32 %s33, 1
        %s413 = scalar_lea.sflag [#allocation6], %s412
        %s414 = sand.u32 %s83, 1
        %s415 = smul.addr %s414, 8
        %s416 = scalar_lea.vmem [#allocation5], %s415
        %p417 = pneg %p96
        %p418 = pneg %p93
        %s419 = sand.u32 %s33, 1
        %s420 = scalar_lea.sflag [#allocation6], %s419
        %s421 = sand.u32 %s111, 1
        %s422 = smul.addr %s421, 8
        %s423 = scalar_lea.vmem [#allocation7], %s422
        %p424 = pneg %p124
        %p425 = pneg %p121
        %p426 = pneg %p145
        %p427 = pneg %p142
        %p428 = pneg %p166
        %p429 = pneg %p163
        %p430 = pneg %p187
        %p431 = pneg %p184
        %p432 = pneg %p215
        %p433 = pneg %p212
        %s434 = sand.u32 %s202, 1
        %s435 = scalar_lea.sflag [#allocation4], %s434
        %s436 = sand.u32 %s202, 1
        %s437 = smul.addr %s436, 8
        %s438 = scalar_lea.vmem [#allocation10], %s437
        %p439 = pneg %p243
        %p440 = pneg %p240
        %s441 = sand.u32 %s33, 1
        %s442 = scalar_lea.sflag [#allocation12], %s441
        %s443 = sand.u32 %s230, 1
        %s444 = smul.addr %s443, 8
        %s445 = scalar_lea.vmem [#allocation11], %s444
        %p446 = pneg %p271
        %p447 = pneg %p268
        %s448 = sand.u32 %s33, 1
        %s449 = scalar_lea.sflag [#allocation12], %s448
        %s450 = sand.u32 %s258, 1
        %s451 = smul.addr %s450, 8
        %s452 = scalar_lea.vmem [#allocation13], %s451
        %v453 = vld [vmem:[%s378] sm:$0xff]
        %v454 = vld [vmem:[%s387] sm:$0xff]
        %v455 = vld [vmem:[%s396] sm:$0xff]
        %v456 = vld [vmem:[%s3] sm:$0xff]
        %v457 = vld [vmem:[#allocation8] sm:$0xff]
        %v458 = vld [vmem:[%s5] sm:$0xff]
        %v459 = vand.u32 2147483647, %v453
        %v460 = vadd.f32 %v459, %v454
        %v461 = vsub.f32 %v460, 0.5
        %v462 = vadd.f32 %v460, 0.5
        %464 = vset.pattern.permute.xlu0 0
        %465 = vperm.xlu0 %464, %v456
        %v466 = vpop.permute.xlu0 %465
        %v468 = vmul.f32 %v466, %v461
        %v469 = vmul.f32 %v466, %v462
        %471 = vset.pattern.permute.xlu0 0
        %472 = vperm.xlu0 %471, %v457
        %v473 = vpop.permute.xlu0 %472
        %v475 = vadd.f32 %v468, %v473
        %v476 = vadd.f32 %v469, %v473
        %v477 = vtanh.pop %v475
        %v478 = vtanh.pop %v476
        %480 = vset.pattern.permute.xlu0 0
        %481 = vperm.xlu0 %480, %v458
        %v482 = vpop.permute.xlu0 %481
        %v484 = vmul.f32 %v482, %v477
        %v485 = vmul.f32 %v482, %v478
        %v486 = vadd.f32 %v475, %v484
        %v487 = vadd.f32 %v476, %v485
        %488 = vset.pattern.permute.xlu0 3
        %489 = vperm.xlu0 %488, %v456
        %v490 = vpop.permute.xlu0 %489
        %v492 = vmul.f32 %v490, %v461
        %v493 = vmul.f32 %v490, %v462
        %494 = vset.pattern.permute.xlu0 1
        %495 = vperm.xlu0 %494, %v457
        %v496 = vpop.permute.xlu0 %495
        %v498 = vadd.f32 %v492, %v496
        %v499 = vadd.f32 %v493, %v496
        %v500 = vtanh.pop %v498
        %v501 = vtanh.pop %v499
        %502 = vset.pattern.permute.xlu0 1
        %503 = vperm.xlu0 %502, %v458
        %v504 = vpop.permute.xlu0 %503
        %v506 = vmul.f32 %v504, %v500
        %v507 = vmul.f32 %v504, %v501
        %v508 = vadd.f32 %v498, %v506
        %v509 = vadd.f32 %v499, %v507
        %510 = vset.pattern.permute.xlu0 6
        %511 = vperm.xlu0 %510, %v456
        %v512 = vpop.permute.xlu0 %511
        %v514 = vmul.f32 %v512, %v461
        %v515 = vmul.f32 %v512, %v462
        %516 = vset.pattern.permute.xlu0 2
        %517 = vperm.xlu0 %516, %v457
        %v518 = vpop.permute.xlu0 %517
        %v520 = vadd.f32 %v514, %v518
        %v521 = vadd.f32 %v515, %v518
        %v522 = vtanh.pop %v520
        %v523 = vtanh.pop %v521
        %524 = vset.pattern.permute.xlu0 2
        %525 = vperm.xlu0 %524, %v458
        %v526 = vpop.permute.xlu0 %525
        %v528 = vmul.f32 %v526, %v522
        %v529 = vmul.f32 %v526, %v523
        %v530 = vadd.f32 %v520, %v528
        %v531 = vadd.f32 %v521, %v529
        %532 = vset.pattern.permute.xlu0 9
        %533 = vperm.xlu0 %532, %v456
        %v534 = vpop.permute.xlu0 %533
        %v536 = vmul.f32 %v534, %v486
        %v537 = vmul.f32 %v534, %v487
        %538 = vset.pattern.permute.xlu0 10
        %539 = vperm.xlu0 %538, %v456
        %v540 = vpop.permute.xlu0 %539
        %v542 = vmul.f32 %v540, %v508
        %v543 = vmul.f32 %v540, %v509
        %v544 = vadd.f32 %v536, %v542
        %v545 = vadd.f32 %v537, %v543
        %546 = vset.pattern.permute.xlu0 11
        %547 = vperm.xlu0 %546, %v456
        %v548 = vpop.permute.xlu0 %547
        %v550 = vmul.f32 %v548, %v530
        %v551 = vmul.f32 %v548, %v531
        %v552 = vadd.f32 %v544, %v550
        %v553 = vadd.f32 %v545, %v551
        %554 = vset.pattern.permute.xlu0 3
        %555 = vperm.xlu0 %554, %v457
        %v556 = vpop.permute.xlu0 %555
        %v558 = vadd.f32 %v552, %v556
        %v559 = vadd.f32 %v553, %v556
        %v560 = vtanh.pop %v558
        %v561 = vtanh.pop %v559
        %562 = vset.pattern.permute.xlu0 3
        %563 = vperm.xlu0 %562, %v458
        %v564 = vpop.permute.xlu0 %563
        %v566 = vmul.f32 %v564, %v560
        %v567 = vmul.f32 %v564, %v561
        %v568 = vadd.f32 %v558, %v566
        %v569 = vadd.f32 %v559, %v567
        %570 = vset.pattern.permute.xlu0 12
        %571 = vperm.xlu0 %570, %v456
        %v572 = vpop.permute.xlu0 %571
        %v574 = vmul.f32 %v572, %v486
        %v575 = vmul.f32 %v572, %v487
        %576 = vset.pattern.permute.xlu0 13
        %577 = vperm.xlu0 %576, %v456
        %v578 = vpop.permute.xlu0 %577
        %v580 = vmul.f32 %v578, %v508
        %v581 = vmul.f32 %v578, %v509
        %v582 = vadd.f32 %v574, %v580
        %v583 = vadd.f32 %v575, %v581
        %584 = vset.pattern.permute.xlu0 14
        %585 = vperm.xlu0 %584, %v456
        %v586 = vpop.permute.xlu0 %585
        %v588 = vmul.f32 %v586, %v530
        %v589 = vmul.f32 %v586, %v531
        %v590 = vadd.f32 %v582, %v588
        %v591 = vadd.f32 %v583, %v589
        %592 = vset.pattern.permute.xlu0 4
        %593 = vperm.xlu0 %592, %v457
        %v594 = vpop.permute.xlu0 %593
        %v596 = vadd.f32 %v590, %v594
        %v597 = vadd.f32 %v591, %v594
        %v598 = vtanh.pop %v596
        %v599 = vtanh.pop %v597
        %600 = vset.pattern.permute.xlu0 4
        %601 = vperm.xlu0 %600, %v458
        %v602 = vpop.permute.xlu0 %601
        %v604 = vmul.f32 %v602, %v598
        %v605 = vmul.f32 %v602, %v599
        %v606 = vadd.f32 %v596, %v604
        %v607 = vadd.f32 %v597, %v605
        %608 = vset.pattern.permute.xlu0 15
        %609 = vperm.xlu0 %608, %v456
        %v610 = vpop.permute.xlu0 %609
        %v612 = vmul.f32 %v610, %v486
        %v613 = vmul.f32 %v610, %v487
        %614 = vset.pattern.permute.xlu0 16
        %615 = vperm.xlu0 %614, %v456
        %v616 = vpop.permute.xlu0 %615
        %v618 = vmul.f32 %v616, %v508
        %v619 = vmul.f32 %v616, %v509
        %v620 = vadd.f32 %v612, %v618
        %v621 = vadd.f32 %v613, %v619
        %622 = vset.pattern.permute.xlu0 17
        %623 = vperm.xlu0 %622, %v456
        %v624 = vpop.permute.xlu0 %623
        %v626 = vmul.f32 %v624, %v530
        %v627 = vmul.f32 %v624, %v531
        %v628 = vadd.f32 %v620, %v626
        %v629 = vadd.f32 %v621, %v627
        %630 = vset.pattern.permute.xlu0 5
        %631 = vperm.xlu0 %630, %v457
        %v632 = vpop.permute.xlu0 %631
        %v634 = vadd.f32 %v628, %v632
        %v635 = vadd.f32 %v629, %v632
        %v636 = vtanh.pop %v634
        %v637 = vtanh.pop %v635
        %638 = vset.pattern.permute.xlu0 5
        %639 = vperm.xlu0 %638, %v458
        %v640 = vpop.permute.xlu0 %639
        %v642 = vmul.f32 %v640, %v636
        %v643 = vmul.f32 %v640, %v637
        %v644 = vadd.f32 %v634, %v642
        %v645 = vadd.f32 %v635, %v643
        %646 = vset.pattern.permute.xlu0 18
        %647 = vperm.xlu0 %646, %v456
        %v648 = vpop.permute.xlu0 %647
        %v650 = vmul.f32 %v648, %v568
        %v651 = vmul.f32 %v648, %v569
        %652 = vset.pattern.permute.xlu0 19
        %653 = vperm.xlu0 %652, %v456
        %v654 = vpop.permute.xlu0 %653
        %v656 = vmul.f32 %v654, %v606
        %v657 = vmul.f32 %v654, %v607
        %v658 = vadd.f32 %v650, %v656
        %v659 = vadd.f32 %v651, %v657
        %660 = vset.pattern.permute.xlu0 20
        %661 = vperm.xlu0 %660, %v456
        %v662 = vpop.permute.xlu0 %661
        %v664 = vmul.f32 %v662, %v644
        %v665 = vmul.f32 %v662, %v645
        %v666 = vadd.f32 %v658, %v664
        %v667 = vadd.f32 %v659, %v665
        %668 = vset.pattern.permute.xlu0 6
        %669 = vperm.xlu0 %668, %v457
        %v670 = vpop.permute.xlu0 %669
        %v672 = vadd.f32 %v666, %v670
        %v673 = vadd.f32 %v667, %v670
        %v674 = vtanh.pop %v672
        %v675 = vtanh.pop %v673
        %676 = vset.pattern.permute.xlu0 6
        %677 = vperm.xlu0 %676, %v458
        %v678 = vpop.permute.xlu0 %677
        %v680 = vmul.f32 %v678, %v674
        %v681 = vmul.f32 %v678, %v675
        %v682 = vadd.f32 %v672, %v680
        %v683 = vadd.f32 %v673, %v681
        %684 = vset.pattern.permute.xlu0 21
        %685 = vperm.xlu0 %684, %v456
        %v686 = vpop.permute.xlu0 %685
        %v688 = vmul.f32 %v686, %v568
        %v689 = vmul.f32 %v686, %v569
        %690 = vset.pattern.permute.xlu0 22
        %691 = vperm.xlu0 %690, %v456
        %v692 = vpop.permute.xlu0 %691
        %v694 = vmul.f32 %v692, %v606
        %v695 = vmul.f32 %v692, %v607
        %v696 = vadd.f32 %v688, %v694
        %v697 = vadd.f32 %v689, %v695
        %698 = vset.pattern.permute.xlu0 23
        %699 = vperm.xlu0 %698, %v456
        %v700 = vpop.permute.xlu0 %699
        %v702 = vmul.f32 %v700, %v644
        %v703 = vmul.f32 %v700, %v645
        %v704 = vadd.f32 %v696, %v702
        %v705 = vadd.f32 %v697, %v703
        %706 = vset.pattern.permute.xlu0 7
        %707 = vperm.xlu0 %706, %v457
        %v708 = vpop.permute.xlu0 %707
        %v710 = vadd.f32 %v704, %v708
        %v711 = vadd.f32 %v705, %v708
        %v712 = vtanh.pop %v710
        %v713 = vtanh.pop %v711
        %714 = vset.pattern.permute.xlu0 7
        %715 = vperm.xlu0 %714, %v458
        %v716 = vpop.permute.xlu0 %715
        %v718 = vmul.f32 %v716, %v712
        %v719 = vmul.f32 %v716, %v713
        %v720 = vadd.f32 %v710, %v718
        %v721 = vadd.f32 %v711, %v719
        %722 = vset.pattern.permute.xlu0 24
        %723 = vperm.xlu0 %722, %v456
        %v724 = vpop.permute.xlu0 %723
        %v726 = vmul.f32 %v724, %v568
        %v727 = vmul.f32 %v724, %v569
        %728 = vset.pattern.permute.xlu0 25
        %729 = vperm.xlu0 %728, %v456
        %v730 = vpop.permute.xlu0 %729
        %v732 = vmul.f32 %v730, %v606
        %v733 = vmul.f32 %v730, %v607
        %v734 = vadd.f32 %v726, %v732
        %v735 = vadd.f32 %v727, %v733
        %736 = vset.pattern.permute.xlu0 26
        %737 = vperm.xlu0 %736, %v456
        %v738 = vpop.permute.xlu0 %737
        %v740 = vmul.f32 %v738, %v644
        %v741 = vmul.f32 %v738, %v645
        %v742 = vadd.f32 %v734, %v740
        %v743 = vadd.f32 %v735, %v741
        %744 = vset.pattern.permute.xlu0 8
        %745 = vperm.xlu0 %744, %v457
        %v746 = vpop.permute.xlu0 %745
        %v748 = vadd.f32 %v742, %v746
        %v749 = vadd.f32 %v743, %v746
        %v750 = vtanh.pop %v748
        %v751 = vtanh.pop %v749
        %752 = vset.pattern.permute.xlu0 8
        %753 = vperm.xlu0 %752, %v458
        %v754 = vpop.permute.xlu0 %753
        %v756 = vmul.f32 %v754, %v750
        %v757 = vmul.f32 %v754, %v751
        %v758 = vadd.f32 %v748, %v756
        %v759 = vadd.f32 %v749, %v757
        %760 = vset.pattern.permute.xlu0 27
        %761 = vperm.xlu0 %760, %v456
        %v762 = vpop.permute.xlu0 %761
        %v764 = vmul.f32 %v762, %v682
        %v765 = vmul.f32 %v762, %v683
        %766 = vset.pattern.permute.xlu0 28
        %767 = vperm.xlu0 %766, %v456
        %v768 = vpop.permute.xlu0 %767
        %v770 = vmul.f32 %v768, %v720
        %v771 = vmul.f32 %v768, %v721
        %v772 = vadd.f32 %v764, %v770
        %v773 = vadd.f32 %v765, %v771
        %774 = vset.pattern.permute.xlu0 29
        %775 = vperm.xlu0 %774, %v456
        %v776 = vpop.permute.xlu0 %775
        %v778 = vmul.f32 %v776, %v758
        %v779 = vmul.f32 %v776, %v759
        %v780 = vadd.f32 %v772, %v778
        %v781 = vadd.f32 %v773, %v779
        %782 = vset.pattern.permute.xlu0 9
        %783 = vperm.xlu0 %782, %v457
        %v784 = vpop.permute.xlu0 %783
        %v786 = vadd.f32 %v780, %v784
        %v787 = vadd.f32 %v781, %v784
        %v788 = vtanh.pop %v786
        %v789 = vtanh.pop %v787
        %790 = vset.pattern.permute.xlu0 9
        %791 = vperm.xlu0 %790, %v458
        %v792 = vpop.permute.xlu0 %791
        %v794 = vmul.f32 %v792, %v788
        %v795 = vmul.f32 %v792, %v789
        %v796 = vadd.f32 %v786, %v794
        %v797 = vadd.f32 %v787, %v795
        %798 = vset.pattern.permute.xlu0 30
        %799 = vperm.xlu0 %798, %v456
        %v800 = vpop.permute.xlu0 %799
        %v802 = vmul.f32 %v800, %v682
        %v803 = vmul.f32 %v800, %v683
        %804 = vset.pattern.permute.xlu0 31
        %805 = vperm.xlu0 %804, %v456
        %v806 = vpop.permute.xlu0 %805
        %v808 = vmul.f32 %v806, %v720
        %v809 = vmul.f32 %v806, %v721
        %v810 = vadd.f32 %v802, %v808
        %v811 = vadd.f32 %v803, %v809
        %812 = vset.pattern.permute.xlu0 32
        %813 = vperm.xlu0 %812, %v456
        %v814 = vpop.permute.xlu0 %813
        %v816 = vmul.f32 %v814, %v758
        %v817 = vmul.f32 %v814, %v759
        %v818 = vadd.f32 %v810, %v816
        %v819 = vadd.f32 %v811, %v817
        %820 = vset.pattern.permute.xlu0 10
        %821 = vperm.xlu0 %820, %v457
        %v822 = vpop.permute.xlu0 %821
        %v824 = vadd.f32 %v818, %v822
        %v825 = vadd.f32 %v819, %v822
        %v826 = vtanh.pop %v824
        %v827 = vtanh.pop %v825
        %828 = vset.pattern.permute.xlu0 10
        %829 = vperm.xlu0 %828, %v458
        %v830 = vpop.permute.xlu0 %829
        %v832 = vmul.f32 %v830, %v826
        %v833 = vmul.f32 %v830, %v827
        %v834 = vadd.f32 %v824, %v832
        %v835 = vadd.f32 %v825, %v833
        %836 = vset.pattern.permute.xlu0 33
        %837 = vperm.xlu0 %836, %v456
        %v838 = vpop.permute.xlu0 %837
        %v840 = vmul.f32 %v838, %v682
        %v841 = vmul.f32 %v838, %v683
        %842 = vset.pattern.permute.xlu0 34
        %843 = vperm.xlu0 %842, %v456
        %v844 = vpop.permute.xlu0 %843
        %v846 = vmul.f32 %v844, %v720
        %v847 = vmul.f32 %v844, %v721
        %v848 = vadd.f32 %v840, %v846
        %v849 = vadd.f32 %v841, %v847
        %850 = vset.pattern.permute.xlu0 35
        %851 = vperm.xlu0 %850, %v456
        %v852 = vpop.permute.xlu0 %851
        %v854 = vmul.f32 %v852, %v758
        %v855 = vmul.f32 %v852, %v759
        %v856 = vadd.f32 %v848, %v854
        %v857 = vadd.f32 %v849, %v855
        %858 = vset.pattern.permute.xlu0 11
        %859 = vperm.xlu0 %858, %v457
        %v860 = vpop.permute.xlu0 %859
        %v862 = vadd.f32 %v856, %v860
        %v863 = vadd.f32 %v857, %v860
        %v864 = vtanh.pop %v862
        %v865 = vtanh.pop %v863
        %866 = vset.pattern.permute.xlu0 11
        %867 = vperm.xlu0 %866, %v458
        %v868 = vpop.permute.xlu0 %867
        %v870 = vmul.f32 %v868, %v864
        %v871 = vmul.f32 %v868, %v865
        %v872 = vadd.f32 %v862, %v870
        %v873 = vadd.f32 %v863, %v871
        %874 = vset.pattern.permute.xlu0 36
        %875 = vperm.xlu0 %874, %v456
        %v876 = vpop.permute.xlu0 %875
        %v878 = vmul.f32 %v876, %v796
        %v879 = vmul.f32 %v876, %v797
        %880 = vset.pattern.permute.xlu0 37
        %881 = vperm.xlu0 %880, %v456
        %v882 = vpop.permute.xlu0 %881
        %v884 = vmul.f32 %v882, %v834
        %v885 = vmul.f32 %v882, %v835
        %v886 = vadd.f32 %v878, %v884
        %v887 = vadd.f32 %v879, %v885
        %888 = vset.pattern.permute.xlu0 38
        %889 = vperm.xlu0 %888, %v456
        %v890 = vpop.permute.xlu0 %889
        %v892 = vmul.f32 %v890, %v872
        %v893 = vmul.f32 %v890, %v873
        %v894 = vadd.f32 %v886, %v892
        %v895 = vadd.f32 %v887, %v893
        %896 = vset.pattern.permute.xlu0 12
        %897 = vperm.xlu0 %896, %v457
        %v898 = vpop.permute.xlu0 %897
        %v900 = vadd.f32 %v894, %v898
        %v901 = vadd.f32 %v895, %v898
        %v902 = vadd.f32 %v900, %v901
        %vm903 = vcmp.lt.f32.partialorder %v902, 0.0
        %v904 = vsel %vm903, 1.0, -1.0
        %v905 = vmul.f32 %v904, %v901
        %v906 = vmax.f32 %v905, -60.0
        %v907 = vmin.f32 %v906, 60.0
        %v908 = vmul.f32 %v904, %v900
        %v909 = vmax.f32 %v908, -60.0
        %v910 = vmin.f32 %v909, 60.0
        %v911 = vmul.f32 %v907, 1.442695
        %v912 = vpow.pop %v911
        %v913 = vmul.f32 %v910, 1.442695
        %v914 = vpow.pop %v913
        %v915 = vsub.f32 %v912, %v914
        %v916 = vand.u32 2147483647, %v915
        %v917 = vadd.f32 %v912, 1.0
        %v918 = vadd.f32 %v914, 1.0
        %v919 = vmul.f32 %v917, %v918
        %v920 = vrcp.pop %v919
        %v921 = vmul.f32 %v916, %v920
        %v922 = vmax.f32 %v921, 1e-09
        %v923 = vmax.f32 %v460, 0.11
        %v924 = vadd.f32 %v453, %v455
        %v925 = vand.u32 2147483647, %v924
        %v926 = vrcp.pop %v923
        %v927 = vmul.f32 0.70710677, %v926
        %v928 = vsub.f32 %v925, 0.5
        %v929 = vmul.f32 %v928, %v927
        %v930 = vand.u32 2147483647, %v929
        %v931 = vmul.f32 %v930, 0.3275911
        %v932 = vadd.f32 %v931, 1.0
        %v933 = vrcp.pop %v932
        %v934 = vmul.f32 1.0, %v933
        %v935 = vmul.f32 %v934, 1.0614054
        %v936 = vadd.f32 %v935, -1.4531521
        %v937 = vmul.f32 %v936, %v934
        %v938 = vadd.f32 %v937, 1.4214138
        %v939 = vmul.f32 %v938, %v934
        %v940 = vadd.f32 %v939, -0.28449672
        %v941 = vmul.f32 %v940, %v934
        %v942 = vadd.f32 %v941, 0.2548296
        %v943 = vmul.f32 %v942, %v934
        %v944 = vmul.f32 %v943, 0.5
        %v945 = vsub.f32 0.0, %v930
        %v946 = vmul.f32 %v945, %v930
        %v947 = vmul.f32 %v946, 1.442695
        %v948 = vpow.pop %v947
        %v949 = vmul.f32 %v944, %v948
        %vm950 = vcmp.ge.f32.partialorder %v929, 0.0
        %v951 = vsub.f32 1.0, %v949
        %v952 = vsel %vm950, %v949, %v951
        %v953 = vadd.f32 %v925, 0.5
        %v954 = vmul.f32 %v953, %v927
        %v955 = vand.u32 2147483647, %v954
        %v956 = vmul.f32 %v955, 0.3275911
        %v957 = vadd.f32 %v956, 1.0
        %v958 = vrcp.pop %v957
        %v959 = vmul.f32 1.0, %v958
        %v960 = vmul.f32 %v959, 1.0614054
        %v961 = vadd.f32 %v960, -1.4531521
        %v962 = vmul.f32 %v961, %v959
        %v963 = vadd.f32 %v962, 1.4214138
        %v964 = vmul.f32 %v963, %v959
        %v965 = vadd.f32 %v964, -0.28449672
        %v966 = vmul.f32 %v965, %v959
        %v967 = vadd.f32 %v966, 0.2548296
        %v968 = vmul.f32 %v967, %v959
        %v969 = vmul.f32 %v968, 0.5
        %v970 = vsub.f32 0.0, %v955
        %v971 = vmul.f32 %v970, %v955
        %v972 = vmul.f32 %v971, 1.442695
        %v973 = vpow.pop %v972
        %v974 = vmul.f32 %v969, %v973
        %vm975 = vcmp.ge.f32.partialorder %v954, 0.0
        %v976 = vsub.f32 1.0, %v974
        %v977 = vsel %vm975, %v974, %v976
        %v978 = vsub.f32 %v952, %v977
        %v979 = vmax.f32 %v978, 1e-09
        %980 = vst [vmem:[%s438] sm:$0xff] %v924
        %981 = vst [vmem:[%s445] sm:$0xff] %v979
        %982 = vst [vmem:[%s452] sm:$0xff] %v922
        %s983 = sand.u32 %s202, 1
        %s984 = scalar_lea.sflag [#allocation4], %s983
        %s985 = sand.u32 %s202, 1
        %s986 = smul.addr %s985, 8
        %s987 = scalar_lea.vmem [#allocation10], %s986
        %s988 = sand.u32 %s33, 1
        %s989 = scalar_lea.sflag [#allocation12], %s988
        %s990 = sand.u32 %s230, 1
        %s991 = smul.addr %s990, 8
        %s992 = scalar_lea.vmem [#allocation11], %s991
        %s993 = sand.u32 %s33, 1
        %s994 = scalar_lea.sflag [#allocation12], %s993
        %s995 = sand.u32 %s258, 1
        %s996 = smul.addr %s995, 8
        %s997 = scalar_lea.vmem [#allocation13], %s996
        // Predicated region
        $region61: #{tpu_custom_call.1} parent=43 // pred_check
          %p998 = pneg %p212
        $region62: #{tpu_custom_call.1} parent=43 // pred_check_branch
          %1000 = sbr.rel (%p998) target = $region64
        $region63: #{tpu_custom_call.1} parent=43 // pred_region
          %s1002 = ssub.s32 128, 128
          %1003 = vsyncadd %s984, %s1002
          %s1004 = smul.addr %s37, 2
          %s1005 = sadd.s32 %s38, %s1004
          %s1006 = smul.addr %s1005, 128
          %s1007 = scalar_lea.hbm %s6, %s1006
          %s1009 = sshll.u32 %s987, 4
          %s1010 = int_to_ptr.vmem [resolvable:$true] %s1009
          %1012 = dma.vmem_to_hbm [thread:$0]  %s1010, 128, %s1007, %s984
        $region64: #{tpu_custom_call.1} parent=43 // pred_fallthru
          _
        // Predicated region
        $region65: #{tpu_custom_call.1} parent=43 // pred_check
          %p1013 = pneg %p240
        $region66: #{tpu_custom_call.1} parent=43 // pred_check_branch
          %1015 = sbr.rel (%p1013) target = $region68
        $region67: #{tpu_custom_call.1} parent=43 // pred_region
          %s1017 = ssub.s32 128, 128
          %1018 = vsyncadd %s989, %s1017
          %s1019 = smul.addr %s37, 2
          %s1020 = sadd.s32 %s38, %s1019
          %s1021 = smul.addr %s1020, 128
          %s1022 = scalar_lea.hbm %s7, %s1021
          %s1024 = sshll.u32 %s992, 4
          %s1025 = int_to_ptr.vmem [resolvable:$true] %s1024
          %1027 = dma.vmem_to_hbm [thread:$0]  %s1025, 128, %s1022, %s989
        $region68: #{tpu_custom_call.1} parent=43 // pred_fallthru
          _
        // Predicated region
        $region69: #{tpu_custom_call.1} parent=43 // pred_check
          %p1028 = pneg %p268
        $region70: #{tpu_custom_call.1} parent=43 // pred_check_branch
          %1030 = sbr.rel (%p1028) target = $region72
        $region71: #{tpu_custom_call.1} parent=43 // pred_region
          %s1032 = ssub.s32 128, 128
          %1033 = vsyncadd %s994, %s1032
          %s1034 = smul.addr %s37, 2
          %s1035 = sadd.s32 %s38, %s1034
          %s1036 = smul.addr %s1035, 128
          %s1037 = scalar_lea.hbm %s8, %s1036
          %s1039 = sshll.u32 %s997, 4
          %s1040 = int_to_ptr.vmem [resolvable:$true] %s1039
          %1042 = dma.vmem_to_hbm [thread:$0]  %s1040, 128, %s1037, %s994
        $region72: #{tpu_custom_call.1} parent=43 // pred_fallthru
          _
      $region44: #{tpu_custom_call.1} parent=5 // pred_fallthru
        _
      %p1043 = scmp.le.s32.totalorder 2, %s28
      // Predicated region
      $region73: #{tpu_custom_call.1} parent=5 // pred_check
        %p1044 = pneg %p1043
      $region74: #{tpu_custom_call.1} parent=5 // pred_check_branch
        %1046 = sbr.rel (%p1044) target = $region76
      $region75: #{tpu_custom_call.1} parent=5 // pred_region
        %s1047 = ssub.s32 %s28, 2
        // Predicated region
        $region77: #{tpu_custom_call.1} parent=75 // pred_check
          %p1048 = pneg %p218
        $region78: #{tpu_custom_call.1} parent=75 // pred_check_branch
          %1050 = sbr.rel (%p1048) target = $region80
        $region79: #{tpu_custom_call.1} parent=75 // pred_region
          %s1051 = sand.u32 %s203, 1
          %s1052 = scalar_lea.sflag [#allocation4], %s1051
          %s1053 = sand.u32 %s203, 1
          %s1054 = smul.addr %s1053, 8
          %s1055 = scalar_lea.vmem [#allocation10], %s1054
          %1056 = dma.done %s1052, 128
        $region80: #{tpu_custom_call.1} parent=75 // pred_fallthru
          _
        // Predicated region
        $region81: #{tpu_custom_call.1} parent=75 // pred_check
          %p1057 = pneg %p246
        $region82: #{tpu_custom_call.1} parent=75 // pred_check_branch
          %1059 = sbr.rel (%p1057) target = $region84
        $region83: #{tpu_custom_call.1} parent=75 // pred_region
          %s1060 = sand.u32 %s34, 1
          %s1061 = scalar_lea.sflag [#allocation12], %s1060
          %s1062 = sand.u32 %s231, 1
          %s1063 = smul.addr %s1062, 8
          %s1064 = scalar_lea.vmem [#allocation11], %s1063
          %1065 = dma.done %s1061, 128
        $region84: #{tpu_custom_call.1} parent=75 // pred_fallthru
          _
        // Predicated region
        $region85: #{tpu_custom_call.1} parent=75 // pred_check
          %p1066 = pneg %p274
        $region86: #{tpu_custom_call.1} parent=75 // pred_check_branch
          %1068 = sbr.rel (%p1066) target = $region88
        $region87: #{tpu_custom_call.1} parent=75 // pred_region
          %s1069 = sand.u32 %s34, 1
          %s1070 = scalar_lea.sflag [#allocation12], %s1069
          %s1071 = sand.u32 %s259, 1
          %s1072 = smul.addr %s1071, 8
          %s1073 = scalar_lea.vmem [#allocation13], %s1072
          %1074 = dma.done %s1070, 128
        $region88: #{tpu_custom_call.1} parent=75 // pred_fallthru
          _
      $region76: #{tpu_custom_call.1} parent=5 // pred_fallthru
        _
    $region6: #{tpu_custom_call.1} parent=1 // loop_footer
      %s32 = sadd.s32 1, %s28
    $region7: #{tpu_custom_call.1} parent=1 // loop_footer_branch
      %27 = sbr.rel target = $region3
    $region8: #{tpu_custom_call.1} parent=1 // loop_exit
      _
    %1075 = vsyncpa [#allocation3], 1
    %s1076 = scalar_lea.sflag [#allocation3], 1
    %1077 = vsyncpa %s1076, 1
    %1078 = vsyncpa [#allocation6], 1
    %s1079 = scalar_lea.sflag [#allocation6], 1
    %1080 = vsyncpa %s1079, 1
    %1081 = vsyncpa [#allocation9], 1
    %1082 = vsyncpa [#allocation4], 1
    %s1083 = scalar_lea.sflag [#allocation4], 1
    %1084 = vsyncpa %s1083, 1
    %1085 = vsyncpa [#allocation12], 1
    %s1086 = scalar_lea.sflag [#allocation12], 1
    %1087 = vsyncpa %s1086, 1

</llo_original>
